<compile_context>
chip_gen: v7x
topology: tpu7x:2x2x1
jax: 0.10.0
libtpu: 0.0.40
codegen_flags: <defaults>
</compile_context>

<pallas_src>
import functools

import jax
import jax.numpy as jnp
from jax.experimental import pallas as pl
from jax.experimental.pallas import tpu as pltpu


def _focal_ssd_kernel(confs_ref, labels_ref, gtb_ref, delta_ref, anc_ref, alpha_ref,
                      out_ref, *, scale_xy, scale_wh, valid_anchors, mask_tail):
    # grid = (batch [parallel], anchor_tiles [arbitrary]).  The output block is per-batch and
    # stays resident across the inner anchor-tile axis -> accumulator (init at tile 0).
    @pl.when(pl.program_id(1) == 0)
    def _():
        out_ref[...] = jnp.zeros_like(out_ref)

    # Cast to f32 as the first in-kernel op (big streams may arrive as bf16; math stays f32).
    confs = confs_ref[0].astype(jnp.float32)      # (C, TN)
    labels = labels_ref[0]                        # (1, TN) int32
    gtb = gtb_ref[0].astype(jnp.float32)          # (4, TN)  gt boxes, rows = [x, y, w, h]
    delta = delta_ref[0].astype(jnp.float32)      # (4, TN)  predicted bbox_delta
    anc = anc_ref[0].astype(jnp.float32)          # (4, TN)  anchors,  rows = [x, y, w, h]
    alpha = alpha_ref[...]                        # (C, 1)   f32

    C, TN = confs.shape

    # ---------- focal classification loss (softmax over class axis, gamma = 2) --------------
    # Select the target class once, then do the focal weighting at (1, TN) width.
    m = jnp.max(confs, axis=0, keepdims=True)                 # (1, TN)
    z = confs - m
    e = jnp.exp(z)                                            # (C, TN)  -> EUP
    logs = jnp.log(jnp.sum(e, axis=0, keepdims=True))         # (1, TN)

    class_ids = jax.lax.broadcasted_iota(jnp.int32, (C, TN), 0)
    sel = class_ids == labels                                 # one_hot(gt_labels) predicate
    z_y = jnp.sum(jnp.where(sel, z, 0.0), axis=0, keepdims=True)          # (1, TN)
    alpha_y = jnp.sum(jnp.where(sel, alpha, 0.0), axis=0, keepdims=True)  # alpha[label]
    logp_y = z_y - logs                                       # log_softmax at target class
    pk_y = jnp.exp(logp_y)                                    # softmax at target class
    one_m = 1.0 - pk_y
    cls_partial = alpha_y * (-(one_m * one_m)) * logp_y       # alpha * -(1-p)^2 * log p

    pos = labels > 0                                          # (1, TN) bool

    # ---------- padded-lane masking (statically removed when num_anchors % tile == 0) --------
    if mask_tail:
        start = pl.program_id(1) * TN
        lane = jax.lax.broadcasted_iota(jnp.int32, (1, TN), 1)
        valid = (start + lane) < valid_anchors
        cls_partial = jnp.where(valid, cls_partial, 0.0)
        pos = jnp.logical_and(pos, valid)

    # ---------- regression: _loc_vec encoding + masked SmoothL1 (beta = 1) -------------------
    anc_wh = anc[2:4, :]                                      # [w, h]
    gxy = scale_xy * (gtb[0:2, :] - anc[0:2, :]) / anc_wh
    # Clamp under the log: background anchors may carry gt w/h == 0; they are masked out below,
    # the clamp just keeps the arithmetic finite (identical for valid positive anchors).
    gwh = scale_wh * jnp.log(jnp.maximum(gtb[2:4, :], 1e-12) / anc_wh)
    gt_loc = jnp.concatenate([gxy, gwh], axis=0)              # (4, TN)

    diff = delta - gt_loc
    ad = jnp.abs(diff)
    sl1 = jnp.where(ad < 1.0, 0.5 * ad * ad, ad - 0.5)        # SmoothL1, beta = 1
    reg_partial = jnp.sum(jnp.where(pos, sl1, 0.0), axis=0, keepdims=True)
    pos_partial = pos.astype(jnp.float32)

    # Fused accumulator rows = [classification, regression, num_pos].
    partial = jnp.concatenate([cls_partial, reg_partial, pos_partial], axis=0)  # (3, TN)
    out_ref[...] += partial[None]


def _pick_tile(na, want):
    # Largest multiple-of-128 tile <= `want` that divides the (padded) anchor count.
    t = min(want, na)
    t -= t % 128
    while na % t:
        t -= 128
    return t


def focal_loss_forward(bbox_delta, confs, gt_bbox, gt_labels, anchors_xywh, alpha,
                       scale_xy=10.0, scale_wh=5.0, tile_n=4096):
    """bbox_delta [B,4,NA], confs [B,C,NA], gt_bbox [B,NA,4], gt_labels [B,NA] (int),
    anchors_xywh [1,4,NA] (or [4,NA]), alpha [C].

    Inputs may be f32 or bf16 (cast to f32 inside the kernel).  Any NA is supported: the anchor
    axis is padded up to a multiple of 128 and padded lanes are masked inside the kernel.
    """
    B, C, NA = confs.shape

    # ----- layout glue only (no dtype up-casting of the big streams) -----
    gtb = jnp.transpose(gt_bbox, (0, 2, 1))                    # [B, 4, NA]
    labels = gt_labels.astype(jnp.int32)[:, None, :]           # [B, 1, NA]
    anc = jnp.asarray(anchors_xywh).reshape(1, 4, NA)          # [1, 4, NA]
    alpha2 = jnp.asarray(alpha, jnp.float32).reshape(C, 1)     # (C, 1)

    # Pad the anchor axis to a multiple of 128 (lane-tiling requirement for partial blocks).
    # Padded labels are 0 (background -> excluded from regression / num_pos); padded lanes are
    # additionally masked out of the classification sum in-kernel.
    na_pad = ((NA + 127) // 128) * 128
    pad = na_pad - NA
    if pad:
        pad3 = ((0, 0), (0, 0), (0, pad))
        confs_p = jnp.pad(confs, pad3)
        delta_p = jnp.pad(bbox_delta, pad3)
        gtb = jnp.pad(gtb, pad3)
        labels = jnp.pad(labels, pad3)
        anc = jnp.pad(anc, pad3, constant_values=1.0)          # keep anchor w/h non-zero
    else:
        confs_p, delta_p = confs, bbox_delta

    tile = _pick_tile(na_pad, tile_n)
    kernel = functools.partial(_focal_ssd_kernel, scale_xy=scale_xy, scale_wh=scale_wh,
                               valid_anchors=NA, mask_tail=bool(pad))

    idx_bn = lambda b, n: (b, 0, n)        # per-batch, per-anchor-tile inputs
    idx_anchor = lambda b, n: (0, 0, n)    # anchors are batch-independent

    out = pl.pallas_call(
        kernel,
        out_shape=jax.ShapeDtypeStruct((B, 3, tile), jnp.float32),
        grid_spec=pltpu.PrefetchScalarGridSpec(
            num_scalar_prefetch=0,
            grid=(B, na_pad // tile),
            in_specs=[
                pl.BlockSpec((1, C, tile), idx_bn),          # confs
                pl.BlockSpec((1, 1, tile), idx_bn),          # gt_labels
                pl.BlockSpec((1, 4, tile), idx_bn),          # gt_bbox (transposed)
                pl.BlockSpec((1, 4, tile), idx_bn),          # bbox_delta
                pl.BlockSpec((1, 4, tile), idx_anchor),      # anchors xywh
                pl.BlockSpec((C, 1), lambda b, n: (0, 0)),   # alpha
            ],
            out_specs=pl.BlockSpec((1, 3, tile), lambda b, n: (b, 0, 0)),
        ),
        compiler_params=pltpu.CompilerParams(
            dimension_semantics=("parallel", "arbitrary")),    # batch shards across TCs on v7x
    )(confs_p, labels, gtb, delta_p, anc, alpha2)

    sums = jnp.sum(out, axis=(0, 2))                           # (3,) = [cls, reg, num_pos]
    classification_loss = sums[0]
    regression_loss = sums[1]
    # TODO(synk): the PyTorch module divides by an unguarded num_pos (inf/nan when there are no
    # positive anchors); we clamp to 1 instead.
    num_pos = jnp.maximum(sums[2], 1.0)

    total_loss = regression_loss / num_pos + classification_loss / num_pos
    to_log = dict(regression_loss=regression_loss / num_pos,
                  classification_loss=classification_loss / num_pos,
                  total_loss=total_loss)
    return total_loss, to_log


# ----------------------------- pure-JAX reference (for checking) -----------------------------
def _reference(bbox_delta, confs, gt_bbox, gt_labels, anchors_xywh, alpha,
               scale_xy=10.0, scale_wh=5.0):
    confs = confs.astype(jnp.float32)
    bbox_delta = bbox_delta.astype(jnp.float32)
    gt_bbox = gt_bbox.astype(jnp.float32)
    anc = jnp.asarray(anchors_xywh, jnp.float32).reshape(1, 4, -1)
    alpha = jnp.asarray(alpha, jnp.float32)
    B, C, NA = confs.shape

    logp = jax.nn.log_softmax(confs, axis=1)
    p = jnp.exp(logp)
    onehot = (jax.lax.broadcasted_iota(jnp.int32, (B, C, NA), 1)
              == gt_labels[:, None, :]).astype(jnp.float32)
    cls = jnp.sum(alpha.reshape(1, C, 1) * (-(1.0 - p) ** 2) * onehot * logp)

    gtb = jnp.transpose(gt_bbox, (0, 2, 1))
    gxy = scale_xy * (gtb[:, :2] - anc[:, :2]) / anc[:, 2:]
    gwh = scale_wh * jnp.log(gtb[:, 2:] / anc[:, 2:])
    gt_loc = jnp.concatenate([gxy, gwh], axis=1)
    ad = jnp.abs(bbox_delta - gt_loc)
    sl1 = jnp.where(ad < 1.0, 0.5 * ad * ad, ad - 0.5)
    pos = (gt_labels > 0)[:, None, :]
    reg = jnp.sum(jnp.where(pos, sl1, 0.0))
    num_pos = jnp.maximum(jnp.sum(pos.astype(jnp.float32)), 1.0)
    return reg / num_pos + cls / num_pos


def _close(a, b, rtol=1e-3, atol=1e-4):
    a, b = float(a), float(b)
    return abs(a - b) <= atol + rtol * max(abs(a), abs(b))


if __name__ == "__main__":
    key = jax.random.PRNGKey(0)

    def make_case(k, B, C, NA, dtype):
        k1, k2, k3, k4, k5 = jax.random.split(k, 5)
        bbox_delta = jax.random.normal(k1, (B, 4, NA), jnp.float32).astype(dtype)
        confs = jax.random.normal(k2, (B, C, NA), jnp.float32).astype(dtype)
        gt_xy = jax.random.uniform(k3, (B, NA, 2), jnp.float32, 0.0, 1.0)
        gt_wh = jax.random.uniform(k5, (B, NA, 2), jnp.float32, 0.05, 1.0)
        gt_bbox = jnp.concatenate([gt_xy, gt_wh], axis=-1).astype(dtype)   # [B, NA, 4], xywh
        gt_labels = jax.random.randint(k4, (B, NA), 0, C)                  # 0 = background
        centers = jnp.linspace(0.05, 0.95, NA, dtype=jnp.float32)
        anchors = jnp.stack([centers, centers,
                             jnp.full((NA,), 0.2, jnp.float32),
                             jnp.full((NA,), 0.3, jnp.float32)], axis=0)[None]  # [1, 4, NA]
        alpha = jnp.array([0.01] + [1.0] * (C - 1), jnp.float32)
        return bbox_delta, confs, gt_bbox, gt_labels, anchors, alpha

    k_a, k_b = jax.random.split(key)

    # Case 1: aligned anchor count (multiple of 128), big streams handed in as bf16.
    args1 = make_case(k_a, B=2, C=8, NA=2048, dtype=jnp.bfloat16)
    total1, logs1 = focal_loss_forward(*args1, scale_xy=10.0, scale_wh=5.0)
    total1 = jax.block_until_ready(total1)
    ref1 = jax.block_until_ready(_reference(*args1, scale_xy=10.0, scale_wh=5.0))
    assert _close(total1, ref1), f"case1 mismatch: kernel={float(total1)} ref={float(ref1)}"

    # Case 2: ragged anchor count (exercises the pad + in-kernel mask path), f32 streams.
    args2 = make_case(k_b, B=2, C=5, NA=200, dtype=jnp.float32)
    total2, _ = focal_loss_forward(*args2, scale_xy=10.0, scale_wh=5.0)
    total2 = jax.block_until_ready(total2)
    ref2 = jax.block_until_ready(_reference(*args2, scale_xy=10.0, scale_wh=5.0))
    assert _close(total2, ref2), f"case2 mismatch: kernel={float(total2)} ref={float(ref2)}"

    print("KERNEL_OK")
</pallas_src>

<mosaic_0001>
module attributes {stable_mosaic.version = 11 : i64} {
  func.func @_focal_ssd_kernel(%arg0: i32, %arg1: i32, %arg2: memref<1x8x2048xbf16, #tpu.memory_space<vmem>>, %arg3: memref<1x1x2048xi32, #tpu.memory_space<vmem>>, %arg4: memref<1x4x2048xbf16, #tpu.memory_space<vmem>>, %arg5: memref<1x4x2048xbf16, #tpu.memory_space<vmem>>, %arg6: memref<1x4x2048xf32, #tpu.memory_space<vmem>>, %arg7: memref<8x1xf32, #tpu.memory_space<vmem>>, %arg8: memref<1x3x2048xf32, #tpu.memory_space<vmem>>) attributes {dimension_semantics = [#tpu.dimension_semantics<parallel>, #tpu.dimension_semantics<arbitrary>], iteration_bounds = array<i64: 2, 1>, scalar_prefetch = 0 : i64, scratch_operands = 0 : i64, tpu.core_type = #tpu.core_type<tc>, window_params = [{transform_indices = @transform_0, window_bounds = array<i64: 1, 8, 2048>}, {transform_indices = @transform_1, window_bounds = array<i64: 1, 1, 2048>}, {transform_indices = @transform_2, window_bounds = array<i64: 1, 4, 2048>}, {transform_indices = @transform_3, window_bounds = array<i64: 1, 4, 2048>}, {transform_indices = @transform_4, window_bounds = array<i64: 1, 4, 2048>}, {pipeline_mode = #tpu.pipeline_mode<synchronous>, transform_indices = @transform_5, window_bounds = array<i64: 8, 1>}, {transform_indices = @transform_6, window_bounds = array<i64: 1, 3, 2048>}]} {
    %c0_i32 = arith.constant 0 : i32
    %0 = arith.cmpi eq, %arg1, %c0_i32 : i32
    %1 = arith.extui %0 : i1 to i32
    %c0_i32_0 = arith.constant 0 : i32
    %2 = arith.cmpi ne, %1, %c0_i32_0 : i32
    scf.if %2 {
      %cst_39 = arith.constant 0.000000e+00 : f32
      %87 = vector.broadcast %cst_39 : f32 to vector<1x3x2048xf32>
      %c0_40 = arith.constant 0 : index
      %c0_41 = arith.constant 0 : index
      %c0_42 = arith.constant 0 : index
      %88 = vector.load %arg8[%c0_40, %c0_41, %c0_42] : memref<1x3x2048xf32, #tpu.memory_space<vmem>>, vector<1x3x2048xf32>
      tpu.vector_store %arg8[%c0_40, %c0_41, %c0_42], %87 {strides = array<i32>} : memref<1x3x2048xf32, #tpu.memory_space<vmem>>, vector<1x3x2048xf32>,
    } else {
    }
    %c0 = arith.constant 0 : index
    %c0_1 = arith.constant 0 : index
    %c0_2 = arith.constant 0 : index
    %3 = vector.load %arg2[%c0, %c0_1, %c0_2] : memref<1x8x2048xbf16, #tpu.memory_space<vmem>>, vector<1x8x2048xbf16>
    %4 = vector.shape_cast %3 : vector<1x8x2048xbf16> to vector<8x2048xbf16>
    %5 = arith.extf %4 : vector<8x2048xbf16> to vector<8x2048xf32>
    %c0_3 = arith.constant 0 : index
    %c0_4 = arith.constant 0 : index
    %c0_5 = arith.constant 0 : index
    %6 = vector.load %arg3[%c0_3, %c0_4, %c0_5] : memref<1x1x2048xi32, #tpu.memory_space<vmem>>, vector<1x1x2048xi32>
    %7 = vector.shape_cast %6 : vector<1x1x2048xi32> to vector<1x2048xi32>
    %c0_6 = arith.constant 0 : index
    %c0_7 = arith.constant 0 : index
    %c0_8 = arith.constant 0 : index
    %8 = vector.load %arg4[%c0_6, %c0_7, %c0_8] : memref<1x4x2048xbf16, #tpu.memory_space<vmem>>, vector<1x4x2048xbf16>
    %9 = vector.shape_cast %8 : vector<1x4x2048xbf16> to vector<4x2048xbf16>
    %10 = arith.extf %9 : vector<4x2048xbf16> to vector<4x2048xf32>
    %c0_9 = arith.constant 0 : index
    %c0_10 = arith.constant 0 : index
    %c0_11 = arith.constant 0 : index
    %11 = vector.load %arg5[%c0_9, %c0_10, %c0_11] : memref<1x4x2048xbf16, #tpu.memory_space<vmem>>, vector<1x4x2048xbf16>
    %12 = vector.shape_cast %11 : vector<1x4x2048xbf16> to vector<4x2048xbf16>
    %13 = arith.extf %12 : vector<4x2048xbf16> to vector<4x2048xf32>
    %c0_12 = arith.constant 0 : index
    %c0_13 = arith.constant 0 : index
    %c0_14 = arith.constant 0 : index
    %14 = vector.load %arg6[%c0_12, %c0_13, %c0_14] : memref<1x4x2048xf32, #tpu.memory_space<vmem>>, vector<1x4x2048xf32>
    %15 = vector.shape_cast %14 : vector<1x4x2048xf32> to vector<4x2048xf32>
    %c0_15 = arith.constant 0 : index
    %c0_16 = arith.constant 0 : index
    %16 = vector.load %arg7[%c0_15, %c0_16] : memref<8x1xf32, #tpu.memory_space<vmem>>, vector<8x1xf32>
    %cst = arith.constant dense<0xFF800000> : vector<2048xf32>
    %17 = vector.multi_reduction <maximumf>, %5, %cst [0] : vector<8x2048xf32> to vector<2048xf32>
    %18 = vector.shape_cast %17 : vector<2048xf32> to vector<1x2048xf32>
    %19 = vector.broadcast %18 : vector<1x2048xf32> to vector<8x2048xf32>
    %20 = arith.subf %5, %19 : vector<8x2048xf32>
    %21 = math.exp %20 : vector<8x2048xf32>
    %cst_17 = arith.constant dense<0.000000e+00> : vector<2048xf32>
    %22 = vector.multi_reduction <add>, %21, %cst_17 [0] : vector<8x2048xf32> to vector<2048xf32>
    %23 = vector.shape_cast %22 : vector<2048xf32> to vector<1x2048xf32>
    %24 = math.log %23 : vector<1x2048xf32>
    %25 = tpu.iota {dimensions = array<i32: 0>} : vector<8x2048xi32>
    %26 = vector.broadcast %7 : vector<1x2048xi32> to vector<8x2048xi32>
    %27 = arith.cmpi eq, %25, %26 : vector<8x2048xi32>
    %cst_18 = arith.constant 0.000000e+00 : f32
    %28 = vector.broadcast %cst_18 : f32 to vector<8x2048xf32>
    %29 = arith.select %27, %20, %28 : vector<8x2048xi1>, vector<8x2048xf32>
    %cst_19 = arith.constant dense<0.000000e+00> : vector<2048xf32>
    %30 = vector.multi_reduction <add>, %29, %cst_19 [0] : vector<8x2048xf32> to vector<2048xf32>
    %31 = vector.shape_cast %30 : vector<2048xf32> to vector<1x2048xf32>
    %cst_20 = arith.constant 0.000000e+00 : f32
    %32 = vector.shape_cast %16 : vector<8x1xf32> to vector<8x1xf32>
    %33 = vector.broadcast %32 : vector<8x1xf32> to vector<8x2048xf32>
    %34 = vector.broadcast %cst_20 : f32 to vector<8x2048xf32>
    %35 = arith.select %27, %33, %34 : vector<8x2048xi1>, vector<8x2048xf32>
    %cst_21 = arith.constant dense<0.000000e+00> : vector<2048xf32>
    %36 = vector.multi_reduction <add>, %35, %cst_21 [0] : vector<8x2048xf32> to vector<2048xf32>
    %37 = vector.shape_cast %36 : vector<2048xf32> to vector<1x2048xf32>
    %38 = arith.subf %31, %24 : vector<1x2048xf32>
    %39 = math.exp %38 : vector<1x2048xf32>
    %cst_22 = arith.constant 1.000000e+00 : f32
    %40 = vector.broadcast %cst_22 : f32 to vector<1x2048xf32>
    %41 = arith.subf %40, %39 : vector<1x2048xf32>
    %42 = arith.mulf %41, %41 : vector<1x2048xf32>
    %cst_23 = arith.constant 0.000000e+00 : f32
    %43 = vector.broadcast %cst_23 : f32 to vector<1x2048xf32>
    %44 = arith.subf %43, %42 : vector<1x2048xf32>
    %45 = arith.mulf %37, %44 : vector<1x2048xf32>
    %46 = arith.mulf %45, %38 : vector<1x2048xf32>
    %c0_i32_24 = arith.constant 0 : i32
    %47 = vector.broadcast %c0_i32_24 : i32 to vector<1x2048xi32>
    %48 = arith.cmpi sgt, %7, %47 : vector<1x2048xi32>
    %49 = vector.extract_strided_slice %15 {offsets = [2, 0], sizes = [2, 2048], strides = [1, 1]} : vector<4x2048xf32> to vector<2x2048xf32>
    %50 = vector.extract_strided_slice %10 {offsets = [0, 0], sizes = [2, 2048], strides = [1, 1]} : vector<4x2048xf32> to vector<2x2048xf32>
    %51 = vector.extract_strided_slice %15 {offsets = [0, 0], sizes = [2, 2048], strides = [1, 1]} : vector<4x2048xf32> to vector<2x2048xf32>
    %52 = arith.subf %50, %51 : vector<2x2048xf32>
    %cst_25 = arith.constant 1.000000e+01 : f32
    %53 = vector.broadcast %cst_25 : f32 to vector<2x2048xf32>
    %54 = arith.mulf %53, %52 : vector<2x2048xf32>
    %55 = arith.divf %54, %49 : vector<2x2048xf32>
    %56 = vector.extract_strided_slice %10 {offsets = [2, 0], sizes = [2, 2048], strides = [1, 1]} : vector<4x2048xf32> to vector<2x2048xf32>
    %cst_26 = arith.constant 9.99999996E-13 : f32
    %57 = vector.broadcast %cst_26 : f32 to vector<2x2048xf32>
    %58 = arith.maximumf %56, %57 : vector<2x2048xf32>
    %59 = arith.divf %58, %49 : vector<2x2048xf32>
    %60 = math.log %59 : vector<2x2048xf32>
    %cst_27 = arith.constant 5.000000e+00 : f32
    %61 = vector.broadcast %cst_27 : f32 to vector<2x2048xf32>
    %62 = arith.mulf %61, %60 : vector<2x2048xf32>
    %63 = tpu.concatenate %55, %62 in 0 : vector<2x2048xf32>, vector<2x2048xf32> -> vector<4x2048xf32>
    %64 = arith.subf %13, %63 : vector<4x2048xf32>
    %65 = math.absf %64 : vector<4x2048xf32>
    %cst_28 = arith.constant 1.000000e+00 : f32
    %66 = vector.broadcast %cst_28 : f32 to vector<4x2048xf32>
    %67 = arith.cmpf olt, %65, %66 : vector<4x2048xf32>
    %cst_29 = arith.constant 5.000000e-01 : f32
    %68 = vector.broadcast %cst_29 : f32 to vector<4x2048xf32>
    %69 = arith.mulf %68, %65 : vector<4x2048xf32>
    %70 = arith.mulf %69, %65 : vector<4x2048xf32>
    %cst_30 = arith.constant 5.000000e-01 : f32
    %71 = vector.broadcast %cst_30 : f32 to vector<4x2048xf32>
    %72 = arith.subf %65, %71 : vector<4x2048xf32>
    %73 = arith.select %67, %70, %72 : vector<4x2048xi1>, vector<4x2048xf32>
    %cst_31 = arith.constant 0.000000e+00 : f32
    %74 = vector.shape_cast %48 : vector<1x2048xi1> to vector<1x2048xi1>
    %75 = vector.broadcast %74 : vector<1x2048xi1> to vector<4x2048xi1>
    %76 = vector.broadcast %cst_31 : f32 to vector<4x2048xf32>
    %77 = arith.select %75, %73, %76 : vector<4x2048xi1>, vector<4x2048xf32>
    %cst_32 = arith.constant dense<0.000000e+00> : vector<2048xf32>
    %78 = vector.multi_reduction <add>, %77, %cst_32 [0] : vector<4x2048xf32> to vector<2048xf32>
    %79 = vector.shape_cast %78 : vector<2048xf32> to vector<1x2048xf32>
    %80 = arith.extui %48 : vector<1x2048xi1> to vector<1x2048xi32>
    %81 = arith.sitofp %80 : vector<1x2048xi32> to vector<1x2048xf32>
    %82 = tpu.concatenate %46, %79, %81 in 0 : vector<1x2048xf32>, vector<1x2048xf32>, vector<1x2048xf32> -> vector<3x2048xf32>
    %c0_33 = arith.constant 0 : index
    %c0_34 = arith.constant 0 : index
    %c0_35 = arith.constant 0 : index
    %83 = vector.load %arg8[%c0_33, %c0_34, %c0_35] : memref<1x3x2048xf32, #tpu.memory_space<vmem>>, vector<1x3x2048xf32>
    %84 = vector.shape_cast %82 : vector<3x2048xf32> to vector<1x3x2048xf32>
    %85 = arith.addf %83, %84 : vector<1x3x2048xf32>
    %c0_36 = arith.constant 0 : index
    %c0_37 = arith.constant 0 : index
    %c0_38 = arith.constant 0 : index
    %86 = vector.load %arg8[%c0_36, %c0_37, %c0_38] : memref<1x3x2048xf32, #tpu.memory_space<vmem>>, vector<1x3x2048xf32>
    tpu.vector_store %arg8[%c0_36, %c0_37, %c0_38], %85 {strides = array<i32>} : memref<1x3x2048xf32, #tpu.memory_space<vmem>>, vector<1x3x2048xf32>,
    return
  }
  func.func @transform_0(%arg0: i32, %arg1: i32) -> (i32, i32, i32) {
    %c0_i32 = arith.constant 0 : i32
    %c0_i32_0 = arith.constant 0 : i32
    return %arg0, %c0_i32, %arg1 : i32, i32, i32
  }
  func.func @transform_1(%arg0: i32, %arg1: i32) -> (i32, i32, i32) {
    %c0_i32 = arith.constant 0 : i32
    %c0_i32_0 = arith.constant 0 : i32
    return %arg0, %c0_i32, %arg1 : i32, i32, i32
  }
  func.func @transform_2(%arg0: i32, %arg1: i32) -> (i32, i32, i32) {
    %c0_i32 = arith.constant 0 : i32
    %c0_i32_0 = arith.constant 0 : i32
    return %arg0, %c0_i32, %arg1 : i32, i32, i32
  }
  func.func @transform_3(%arg0: i32, %arg1: i32) -> (i32, i32, i32) {
    %c0_i32 = arith.constant 0 : i32
    %c0_i32_0 = arith.constant 0 : i32
    return %arg0, %c0_i32, %arg1 : i32, i32, i32
  }
  func.func @transform_4(%arg0: i32, %arg1: i32) -> (i32, i32, i32) {
    %c0_i32 = arith.constant 0 : i32
    %c0_i32_0 = arith.constant 0 : i32
    %c0_i32_1 = arith.constant 0 : i32
    return %c0_i32, %c0_i32_0, %arg1 : i32, i32, i32
  }
  func.func @transform_5(%arg0: i32, %arg1: i32) -> (i32, i32) {
    %c0_i32 = arith.constant 0 : i32
    %c0_i32_0 = arith.constant 0 : i32
    %c0_i32_1 = arith.constant 0 : i32
    return %c0_i32, %c0_i32_0 : i32, i32
  }
  func.func @transform_6(%arg0: i32, %arg1: i32) -> (i32, i32, i32) {
    %c0_i32 = arith.constant 0 : i32
    %c0_i32_0 = arith.constant 0 : i32
    %c0_i32_1 = arith.constant 0 : i32
    return %arg0, %c0_i32, %c0_i32_0 : i32, i32, i32
  }
}

</mosaic_0001>

<llo_original>
// kernel: tpu_custom_call.1
$region0: #{tpu_custom_call.1}
  #allocation0 [shape = 'u32[]', space=smem, size = 0x4, offset = 0x4, fixed_abs, tag = 'smem constant byte address 0x4 - core index']
  #allocation1 [shape = 'u32[144,128]{1,0:T(1,128)}', space=vmem, size = 0x12000, scoped, tag = 'internal scratch']
  %s0 = inlined_call_operand.hbm [shape: bf16[2,8,2048], index: 0, kind: input, shape index: {}]
  %s1 = inlined_call_operand.hbm [shape: s32[2,1,2048], index: 1, kind: input, shape index: {}]
  %s2 = inlined_call_operand.hbm [shape: bf16[2,4,2048], index: 2, kind: input, shape index: {}]
  %s3 = inlined_call_operand.hbm [shape: bf16[2,4,2048], index: 3, kind: input, shape index: {}]
  %s4 = inlined_call_operand.hbm [shape: f32[1,4,2048], index: 4, kind: input, shape index: {}]
  %s5 = inlined_call_operand.vmem [shape: f32[8,1], index: 5, kind: input, shape index: {}]
  %s6 = inlined_call_operand.vmem [shape: f32[2,3,2048], index: 6, kind: output, shape index: {}]
  %s7 = sld [smem:[#allocation0]]
  $region81: #{tpu_custom_call.1} parent=0
    _
  %s9 = ssub.s32 1, %s7
  %s10 = scalar_select 0, %s9, %s7
  $region1: #{tpu_custom_call.1} parent=0
    #allocation2 [shape = 'u8[65536]{0}', space=vmem, size = 0x10000, scoped, tag = 'input window, operand 0']
    #allocation3 [shape = 's32[2]{0}', space=sflag, size = 0x8, scoped, tag = 'scoped memory for tpu_custom_call.1']
    #allocation4 [shape = 'u8[16384]{0}', space=vmem, size = 0x4000, scoped, tag = 'input window, operand 1']
    #allocation5 [shape = 's32[2]{0}', space=sflag, size = 0x8, scoped, tag = 'scoped memory for tpu_custom_call.1']
    #allocation6 [shape = 'u8[32768]{0}', space=vmem, size = 0x8000, scoped, tag = 'input window, operand 2']
    #allocation7 [shape = 'u8[32768]{0}', space=vmem, size = 0x8000, scoped, tag = 'input window, operand 3']
    #allocation8 [shape = 's32[2]{0}', space=sflag, size = 0x8, scoped, tag = 'scoped memory for tpu_custom_call.1']
    #allocation9 [shape = 'u8[32768]{0}', space=vmem, size = 0x8000, scoped, tag = 'input window, operand 4, single buffered']
    %11 = vsyncpa [#allocation3], 0
    %s12 = scalar_lea.sflag [#allocation3], 1
    %13 = vsyncpa %s12, 0
    %14 = vsyncpa [#allocation5], 0
    %s15 = scalar_lea.sflag [#allocation5], 1
    %16 = vsyncpa %s15, 0
    %17 = vsyncpa [#allocation8], 0
    %s18 = scalar_lea.sflag [#allocation8], 1
    %19 = vsyncpa %s18, 0
    loop: start=0, step=1, limit=4
    $region2: #{tpu_custom_call.1} parent=1 // loop_pre_header
      _
    $region3: #{tpu_custom_call.1} parent=1 // loop_header
      %s21 = sphi 0, %s25
      %p22 = scmp.ge.s32.totalorder %s21, 4
      %s28 = sphi 0, %s40
      %s29 = sphi 0, %s36
      %s30 = sphi 0, %s28
      %s31 = sphi 0, %s29
      %s32 = sphi 0, %s30
      %s33 = sphi 0, %s31
      %s45 = sphi 0, %s47
      %s48 = sphi 0, %s45
      %s49 = sphi 0, %s48
      %s65 = sphi 0, %s49
      %s73 = sphi 0, %s75
      %s76 = sphi 0, %s73
      %s77 = sphi 0, %s76
      %s93 = sphi 0, %s77
      %s101 = sphi 0, %s103
      %s104 = sphi 0, %s101
      %s105 = sphi 0, %s104
      %s121 = sphi 0, %s105
      %s129 = sphi 0, %s131
      %s132 = sphi 0, %s129
      %s133 = sphi 0, %s132
      %s149 = sphi 0, %s133
      %s155 = sphi 0, %s157
      %s158 = sphi 0, %s155
      %s159 = sphi 0, %s158
      %s175 = sphi 0, %s159
      %s179 = sphi 0, %s179
      %s181 = sphi 0, %s179
      %s182 = sphi 0, %s181
      %s196 = sphi 0, %s182
      %s202 = sphi 0, %s204
      %s205 = sphi 0, %s202
      %s206 = sphi 0, %s205
      %s222 = sphi 0, %s206
    $region4: #{tpu_custom_call.1} parent=1 // loop_header_branch
      %24 = sbr.rel (%p22) target = $region8
    $region5: #{tpu_custom_call.1} parent=1 // loop_body
      %s26 = ssub.s32 %s21, 1
      %s27 = ssub.s32 %s21, 2
      %s34 = sadd.s32 1, %s29
      %p35 = scmp.ge.s32.totalorder %s34, 1
      %s36 = scalar_select %p35, 0, %s34
      %s37 = sadd.s32 1, %s28
      %s38 = scalar_select %p35, %s37, %s28
      %p39 = scmp.ge.s32.totalorder %s38, 2
      %s40 = scalar_select %p39, 0, %s38
      %s41 = ssub.s32 %s28, %s40
      %s42 = ssub.s32 %s29, %s36
      %s43 = sor.u32 %s41, %s42
      %p44 = scmp.eq.s32.totalorder %s43, 0
      %s46 = sadd.s32 %s45, 1
      %s47 = scalar_select %p44, %s45, %s46
      %p50 = pneg %p44
      %p51 = scmp.eq.s32.totalorder %s21, 1
      %p52 = por %p50, %p51
      %p53 = scmp.ne.s32.totalorder %s45, %s48
      %p54 = scmp.eq.s32.totalorder %s21, 0
      %p55 = por %p53, %p54
      %p56 = scmp.ne.s32.totalorder %s45, %s48
      %p57 = scmp.eq.s32.totalorder %s26, 1
      %p58 = por %p56, %p57
      %p59 = scmp.ne.s32.totalorder %s48, %s49
      %p60 = scmp.eq.s32.totalorder %s26, 0
      %p61 = por %p59, %p60
      %p62 = scmp.ne.s32.totalorder %s48, %s49
      %p63 = scmp.eq.s32.totalorder %s27, 1
      %p64 = por %p62, %p63
      %p66 = scmp.ne.s32.totalorder %s49, %s65
      %p67 = scmp.eq.s32.totalorder %s27, 0
      %p68 = por %p66, %p67
      %s69 = ssub.s32 %s28, %s40
      %s70 = ssub.s32 %s29, %s36
      %s71 = sor.u32 %s69, %s70
      %p72 = scmp.eq.s32.totalorder %s71, 0
      %s74 = sadd.s32 %s73, 1
      %s75 = scalar_select %p72, %s73, %s74
      %p78 = pneg %p72
      %p79 = scmp.eq.s32.totalorder %s21, 1
      %p80 = por %p78, %p79
      %p81 = scmp.ne.s32.totalorder %s73, %s76
      %p82 = scmp.eq.s32.totalorder %s21, 0
      %p83 = por %p81, %p82
      %p84 = scmp.ne.s32.totalorder %s73, %s76
      %p85 = scmp.eq.s32.totalorder %s26, 1
      %p86 = por %p84, %p85
      %p87 = scmp.ne.s32.totalorder %s76, %s77
      %p88 = scmp.eq.s32.totalorder %s26, 0
      %p89 = por %p87, %p88
      %p90 = scmp.ne.s32.totalorder %s76, %s77
      %p91 = scmp.eq.s32.totalorder %s27, 1
      %p92 = por %p90, %p91
      %p94 = scmp.ne.s32.totalorder %s77, %s93
      %p95 = scmp.eq.s32.totalorder %s27, 0
      %p96 = por %p94, %p95
      %s97 = ssub.s32 %s28, %s40
      %s98 = ssub.s32 %s29, %s36
      %s99 = sor.u32 %s97, %s98
      %p100 = scmp.eq.s32.totalorder %s99, 0
      %s102 = sadd.s32 %s101, 1
      %s103 = scalar_select %p100, %s101, %s102
      %p106 = pneg %p100
      %p107 = scmp.eq.s32.totalorder %s21, 1
      %p108 = por %p106, %p107
      %p109 = scmp.ne.s32.totalorder %s101, %s104
      %p110 = scmp.eq.s32.totalorder %s21, 0
      %p111 = por %p109, %p110
      %p112 = scmp.ne.s32.totalorder %s101, %s104
      %p113 = scmp.eq.s32.totalorder %s26, 1
      %p114 = por %p112, %p113
      %p115 = scmp.ne.s32.totalorder %s104, %s105
      %p116 = scmp.eq.s32.totalorder %s26, 0
      %p117 = por %p115, %p116
      %p118 = scmp.ne.s32.totalorder %s104, %s105
      %p119 = scmp.eq.s32.totalorder %s27, 1
      %p120 = por %p118, %p119
      %p122 = scmp.ne.s32.totalorder %s105, %s121
      %p123 = scmp.eq.s32.totalorder %s27, 0
      %p124 = por %p122, %p123
      %s125 = ssub.s32 %s28, %s40
      %s126 = ssub.s32 %s29, %s36
      %s127 = sor.u32 %s125, %s126
      %p128 = scmp.eq.s32.totalorder %s127, 0
      %s130 = sadd.s32 %s129, 1
      %s131 = scalar_select %p128, %s129, %s130
      %p134 = pneg %p128
      %p135 = scmp.eq.s32.totalorder %s21, 1
      %p136 = por %p134, %p135
      %p137 = scmp.ne.s32.totalorder %s129, %s132
      %p138 = scmp.eq.s32.totalorder %s21, 0
      %p139 = por %p137, %p138
      %p140 = scmp.ne.s32.totalorder %s129, %s132
      %p141 = scmp.eq.s32.totalorder %s26, 1
      %p142 = por %p140, %p141
      %p143 = scmp.ne.s32.totalorder %s132, %s133
      %p144 = scmp.eq.s32.totalorder %s26, 0
      %p145 = por %p143, %p144
      %p146 = scmp.ne.s32.totalorder %s132, %s133
      %p147 = scmp.eq.s32.totalorder %s27, 1
      %p148 = por %p146, %p147
      %p150 = scmp.ne.s32.totalorder %s133, %s149
      %p151 = scmp.eq.s32.totalorder %s27, 0
      %p152 = por %p150, %p151
      %s153 = ssub.s32 %s29, %s36
      %p154 = scmp.eq.s32.totalorder %s153, 0
      %s156 = sadd.s32 %s155, 1
      %s157 = scalar_select %p154, %s155, %s156
      %p160 = pneg %p154
      %p161 = scmp.eq.s32.totalorder %s21, 1
      %p162 = por %p160, %p161
      %p163 = scmp.ne.s32.totalorder %s155, %s158
      %p164 = scmp.eq.s32.totalorder %s21, 0
      %p165 = por %p163, %p164
      %p166 = scmp.ne.s32.totalorder %s155, %s158
      %p167 = scmp.eq.s32.totalorder %s26, 1
      %p168 = por %p166, %p167
      %p169 = scmp.ne.s32.totalorder %s158, %s159
      %p170 = scmp.eq.s32.totalorder %s26, 0
      %p171 = por %p169, %p170
      %p172 = scmp.ne.s32.totalorder %s158, %s159
      %p173 = scmp.eq.s32.totalorder %s27, 1
      %p174 = por %p172, %p173
      %p176 = scmp.ne.s32.totalorder %s159, %s175
      %p177 = scmp.eq.s32.totalorder %s27, 0
      %p178 = por %p176, %p177
      %s180 = sadd.s32 %s179, 1
      %p183 = scmp.eq.s32.totalorder %s21, 1
      %p184 = scmp.ne.s32.totalorder %s179, %s181
      %p185 = scmp.eq.s32.totalorder %s21, 0
      %p186 = por %p184, %p185
      %p187 = scmp.ne.s32.totalorder %s179, %s181
      %p188 = scmp.eq.s32.totalorder %s26, 1
      %p189 = por %p187, %p188
      %p190 = scmp.ne.s32.totalorder %s181, %s182
      %p191 = scmp.eq.s32.totalorder %s26, 0
      %p192 = por %p190, %p191
      %p193 = scmp.ne.s32.totalorder %s181, %s182
      %p194 = scmp.eq.s32.totalorder %s27, 1
      %p195 = por %p193, %p194
      %p197 = scmp.ne.s32.totalorder %s182, %s196
      %p198 = scmp.eq.s32.totalorder %s27, 0
      %p199 = por %p197, %p198
      %s200 = ssub.s32 %s28, %s40
      %p201 = scmp.eq.s32.totalorder %s200, 0
      %s203 = sadd.s32 %s202, 1
      %s204 = scalar_select %p201, %s202, %s203
      %p207 = pneg %p201
      %p208 = scmp.eq.s32.totalorder %s21, 1
      %p209 = por %p207, %p208
      %p210 = scmp.ne.s32.totalorder %s202, %s205
      %p211 = scmp.eq.s32.totalorder %s21, 0
      %p212 = por %p210, %p211
      %p213 = scmp.ne.s32.totalorder %s202, %s205
      %p214 = scmp.eq.s32.totalorder %s26, 1
      %p215 = por %p213, %p214
      %p216 = scmp.ne.s32.totalorder %s205, %s206
      %p217 = scmp.eq.s32.totalorder %s26, 0
      %p218 = por %p216, %p217
      %p219 = scmp.ne.s32.totalorder %s205, %s206
      %p220 = scmp.eq.s32.totalorder %s27, 1
      %p221 = por %p219, %p220
      %p223 = scmp.ne.s32.totalorder %s206, %s222
      %p224 = scmp.eq.s32.totalorder %s27, 0
      %p225 = por %p223, %p224
      %p226 = scmp.le.s32.totalorder 1, %s21
      %p227 = scmp.lt.s32.totalorder %s21, 3
      %p228 = pnand %p226, %p227
      %p229 = pneg %p228
      // Predicated region
      $region9: #{tpu_custom_call.1} parent=5 // pred_check
        _
      $region10: #{tpu_custom_call.1} parent=5 // pred_check_branch
        %231 = sbr.rel (%p228) target = $region12
      $region11: #{tpu_custom_call.1} parent=5 // pred_region
        %s232 = ssub.s32 %s21, 1
        // Predicated region
        $region13: #{tpu_custom_call.1} parent=11 // pred_check
          %p233 = pneg %p171
        $region14: #{tpu_custom_call.1} parent=11 // pred_check_branch
          %235 = sbr.rel (%p233) target = $region16
        $region15: #{tpu_custom_call.1} parent=11 // pred_region
          %s236 = smul.u32 16, %s31
          %s238 = ssub.s32 1024, 1024
          %239 = vsyncadd [#allocation8], %s238
          %s240 = smul.addr %s236, 64
          %s241 = scalar_lea.hbm %s4, %s240
          %s243 = sshll.u32 [#allocation9], 4
          %s244 = int_to_ptr.vmem [resolvable:$true] %s243
          %246 = dma.hbm_to_vmem [thread:$0]  %s241, 1024, %s244, [#allocation8]
        $region16: #{tpu_custom_call.1} parent=11 // pred_fallthru
          _
        // Predicated region
        $region17: #{tpu_custom_call.1} parent=11 // pred_check
          %p247 = pneg %p192
        $region18: #{tpu_custom_call.1} parent=11 // pred_check_branch
          %249 = sbr.rel (%p247) target = $region20
        $region19: #{tpu_custom_call.1} parent=11 // pred_region
          _
        $region20: #{tpu_custom_call.1} parent=11 // pred_fallthru
          _
      $region12: #{tpu_custom_call.1} parent=5 // pred_fallthru
        _
      %p250 = scmp.lt.s32.totalorder %s21, 2
      // Predicated region
      $region21: #{tpu_custom_call.1} parent=5 // pred_check
        %p251 = pneg %p250
      $region22: #{tpu_custom_call.1} parent=5 // pred_check_branch
        %253 = sbr.rel (%p251) target = $region24
      $region23: #{tpu_custom_call.1} parent=5 // pred_region
        // Predicated region
        $region25: #{tpu_custom_call.1} parent=23 // pred_check
          %p254 = pneg %p55
        $region26: #{tpu_custom_call.1} parent=23 // pred_check_branch
          %256 = sbr.rel (%p254) target = $region28
        $region27: #{tpu_custom_call.1} parent=23 // pred_region
          %s257 = sand.u32 %s45, 1
          %s258 = scalar_lea.sflag [#allocation3], %s257
          %s259 = sand.u32 %s45, 1
          %s260 = smul.addr %s259, 64
          %s261 = scalar_lea.vmem [#allocation2], %s260
          %s262 = smul.u32 16, %s29
          %s264 = ssub.s32 1024, 1024
          %265 = vsyncadd %s258, %s264
          %s266 = smul.addr %s28, 16
          %s267 = sadd.s32 %s262, %s266
          %s268 = smul.addr %s267, 64
          %s269 = scalar_lea.hbm %s0, %s268
          %s271 = sshll.u32 %s261, 4
          %s272 = int_to_ptr.vmem [resolvable:$true] %s271
          %274 = dma.hbm_to_vmem [thread:$0]  %s269, 1024, %s272, %s258
        $region28: #{tpu_custom_call.1} parent=23 // pred_fallthru
          _
        // Predicated region
        $region29: #{tpu_custom_call.1} parent=23 // pred_check
          %p275 = pneg %p83
        $region30: #{tpu_custom_call.1} parent=23 // pred_check_branch
          %277 = sbr.rel (%p275) target = $region32
        $region31: #{tpu_custom_call.1} parent=23 // pred_region
          %s278 = sand.u32 %s21, 1
          %s279 = scalar_lea.sflag [#allocation5], %s278
          %s280 = sand.u32 %s73, 1
          %s281 = smul.addr %s280, 16
          %s282 = scalar_lea.vmem [#allocation4], %s281
          %s283 = smul.u32 16, %s29
          %s285 = ssub.s32 256, 256
          %286 = vsyncadd %s279, %s285
          %s287 = smul.addr %s28, 16
          %s288 = sadd.s32 %s283, %s287
          %s289 = smul.addr %s288, 16
          %s290 = scalar_lea.hbm %s1, %s289
          %s292 = sshll.u32 %s282, 4
          %s293 = int_to_ptr.vmem [resolvable:$true] %s292
          %295 = dma.hbm_to_vmem [thread:$0]  %s290, 256, %s293, %s279
        $region32: #{tpu_custom_call.1} parent=23 // pred_fallthru
          _
        // Predicated region
        $region33: #{tpu_custom_call.1} parent=23 // pred_check
          %p296 = pneg %p111
        $region34: #{tpu_custom_call.1} parent=23 // pred_check_branch
          %298 = sbr.rel (%p296) target = $region36
        $region35: #{tpu_custom_call.1} parent=23 // pred_region
          %s299 = sand.u32 %s21, 1
          %s300 = scalar_lea.sflag [#allocation5], %s299
          %s301 = sand.u32 %s101, 1
          %s302 = smul.addr %s301, 32
          %s303 = scalar_lea.vmem [#allocation6], %s302
          %s304 = smul.u32 16, %s29
          %s306 = ssub.s32 512, 512
          %307 = vsyncadd %s300, %s306
          %s308 = smul.addr %s28, 16
          %s309 = sadd.s32 %s304, %s308
          %s310 = smul.addr %s309, 32
          %s311 = scalar_lea.hbm %s2, %s310
          %s313 = sshll.u32 %s303, 4
          %s314 = int_to_ptr.vmem [resolvable:$true] %s313
          %316 = dma.hbm_to_vmem [thread:$0]  %s311, 512, %s314, %s300
        $region36: #{tpu_custom_call.1} parent=23 // pred_fallthru
          _
        // Predicated region
        $region37: #{tpu_custom_call.1} parent=23 // pred_check
          %p317 = pneg %p139
        $region38: #{tpu_custom_call.1} parent=23 // pred_check_branch
          %319 = sbr.rel (%p317) target = $region40
        $region39: #{tpu_custom_call.1} parent=23 // pred_region
          %s320 = sand.u32 %s21, 1
          %s321 = scalar_lea.sflag [#allocation8], %s320
          %s322 = sand.u32 %s129, 1
          %s323 = smul.addr %s322, 32
          %s324 = scalar_lea.vmem [#allocation7], %s323
          %s325 = smul.u32 16, %s29
          %s327 = ssub.s32 512, 512
          %328 = vsyncadd %s321, %s327
          %s329 = smul.addr %s28, 16
          %s330 = sadd.s32 %s325, %s329
          %s331 = smul.addr %s330, 32
          %s332 = scalar_lea.hbm %s3, %s331
          %s334 = sshll.u32 %s324, 4
          %s335 = int_to_ptr.vmem [resolvable:$true] %s334
          %337 = dma.hbm_to_vmem [thread:$0]  %s332, 512, %s335, %s321
        $region40: #{tpu_custom_call.1} parent=23 // pred_fallthru
          _
      $region24: #{tpu_custom_call.1} parent=5 // pred_fallthru
        _
      %p338 = scmp.le.s32.totalorder 1, %s21
      %p339 = scmp.lt.s32.totalorder %s21, 3
      %p340 = pnand %p338, %p339
      %p341 = pneg %p340
      // Predicated region
      $region41: #{tpu_custom_call.1} parent=5 // pred_check
        _
      $region42: #{tpu_custom_call.1} parent=5 // pred_check_branch
        %343 = sbr.rel (%p340) target = $region44
      $region43: #{tpu_custom_call.1} parent=5 // pred_region
        %s344 = ssub.s32 %s21, 1
        %s345 = sand.u32 %s48, 1
        %s346 = scalar_lea.sflag [#allocation3], %s345
        %s347 = sand.u32 %s48, 1
        %s348 = smul.addr %s347, 64
        %s349 = scalar_lea.vmem [#allocation2], %s348
        // Predicated region
        $region45: #{tpu_custom_call.1} parent=43 // pred_check
          %p350 = pneg %p61
        $region46: #{tpu_custom_call.1} parent=43 // pred_check_branch
          %352 = sbr.rel (%p350) target = $region48
        $region47: #{tpu_custom_call.1} parent=43 // pred_region
          %353 = dma.done %s346, 1024
        $region48: #{tpu_custom_call.1} parent=43 // pred_fallthru
          _
        %s354 = sand.u32 %s26, 1
        %s355 = scalar_lea.sflag [#allocation5], %s354
        %s356 = sand.u32 %s76, 1
        %s357 = smul.addr %s356, 16
        %s358 = scalar_lea.vmem [#allocation4], %s357
        // Predicated region
        $region49: #{tpu_custom_call.1} parent=43 // pred_check
          %p359 = pneg %p89
        $region50: #{tpu_custom_call.1} parent=43 // pred_check_branch
          %361 = sbr.rel (%p359) target = $region52
        $region51: #{tpu_custom_call.1} parent=43 // pred_region
          %362 = dma.done %s355, 256
        $region52: #{tpu_custom_call.1} parent=43 // pred_fallthru
          _
        %s363 = sand.u32 %s26, 1
        %s364 = scalar_lea.sflag [#allocation5], %s363
        %s365 = sand.u32 %s104, 1
        %s366 = smul.addr %s365, 32
        %s367 = scalar_lea.vmem [#allocation6], %s366
        // Predicated region
        $region53: #{tpu_custom_call.1} parent=43 // pred_check
          %p368 = pneg %p117
        $region54: #{tpu_custom_call.1} parent=43 // pred_check_branch
          %370 = sbr.rel (%p368) target = $region56
        $region55: #{tpu_custom_call.1} parent=43 // pred_region
          %371 = dma.done %s364, 512
        $region56: #{tpu_custom_call.1} parent=43 // pred_fallthru
          _
        %s372 = sand.u32 %s26, 1
        %s373 = scalar_lea.sflag [#allocation8], %s372
        %s374 = sand.u32 %s132, 1
        %s375 = smul.addr %s374, 32
        %s376 = scalar_lea.vmem [#allocation7], %s375
        // Predicated region
        $region57: #{tpu_custom_call.1} parent=43 // pred_check
          %p377 = pneg %p145
        $region58: #{tpu_custom_call.1} parent=43 // pred_check_branch
          %379 = sbr.rel (%p377) target = $region60
        $region59: #{tpu_custom_call.1} parent=43 // pred_region
          %380 = dma.done %s373, 512
        $region60: #{tpu_custom_call.1} parent=43 // pred_fallthru
          _
        // Predicated region
        $region61: #{tpu_custom_call.1} parent=43 // pred_check
          %p381 = pneg %p171
        $region62: #{tpu_custom_call.1} parent=43 // pred_check_branch
          %383 = sbr.rel (%p381) target = $region64
        $region63: #{tpu_custom_call.1} parent=43 // pred_region
          %384 = dma.done [#allocation8], 1024
        $region64: #{tpu_custom_call.1} parent=43 // pred_fallthru
          _
        %s385 = sand.u32 %s48, 1
        %s386 = scalar_lea.sflag [#allocation3], %s385
        %s387 = sand.u32 %s48, 1
        %s388 = smul.addr %s387, 64
        %s389 = scalar_lea.vmem [#allocation2], %s388
        %p390 = pneg %p61
        %p391 = pneg %p58
        %s392 = sand.u32 %s26, 1
        %s393 = scalar_lea.sflag [#allocation5], %s392
        %s394 = sand.u32 %s76, 1
        %s395 = smul.addr %s394, 16
        %s396 = scalar_lea.vmem [#allocation4], %s395
        %p397 = pneg %p89
        %p398 = pneg %p86
        %s399 = sand.u32 %s26, 1
        %s400 = scalar_lea.sflag [#allocation5], %s399
        %s401 = sand.u32 %s104, 1
        %s402 = smul.addr %s401, 32
        %s403 = scalar_lea.vmem [#allocation6], %s402
        %p404 = pneg %p117
        %p405 = pneg %p114
        %s406 = sand.u32 %s26, 1
        %s407 = scalar_lea.sflag [#allocation8], %s406
        %s408 = sand.u32 %s132, 1
        %s409 = smul.addr %s408, 32
        %s410 = scalar_lea.vmem [#allocation7], %s409
        %p411 = pneg %p145
        %p412 = pneg %p142
        %p413 = pneg %p171
        %p414 = pneg %p168
        %p415 = pneg %p192
        %p416 = pneg %p189
        %p417 = pneg %p218
        %p418 = pneg %p215
        %p419 = scmp.lt.s32.totalorder %s30, 1
        %s420 = scalar_select %p419, %s30, 1
        %s421 = smul.addr %s420, 16
        %s422 = smul.addr %s421, 4
        %s423 = scalar_lea.vmem %s6, %s422
        %s424 = smul.u32 16, %s31
        %s425 = smul.u32 16, %s31
        %s426 = smul.u32 16, %s31
        %s427 = smul.u32 16, %s31
        %s428 = smul.u32 16, %s31
        %p429 = scmp.lt.s32.totalorder %s30, 1
        %s430 = scalar_select %p429, %s30, 1
        %s431 = smul.addr %s430, 16
        %s432 = smul.addr %s431, 4
        %s433 = scalar_lea.vmem %s6, %s432
        %p434 = scmp.eq.s32.totalorder %s31, 0
        // Predicated region
        $region65: #{tpu_custom_call.1} parent=43 // pred_check
          %p435 = pneg %p434
        $region66: #{tpu_custom_call.1} parent=43 // pred_check_branch
          %437 = sbr.rel (%p435) target = $region68
        $region67: #{tpu_custom_call.1} parent=43 // pred_region
          %438 = vst [vmem:[%s433] sm:$0x77] 0.0
          %439 = vst [vmem:[%s433 + $0x8] sm:$0x77] 0.0
          %440 = vst [vmem:[%s433 + $0x10] sm:$0x77] 0.0
          %441 = vst [vmem:[%s433 + $0x18] sm:$0x77] 0.0
          %442 = vst [vmem:[%s433 + $0x20] sm:$0x77] 0.0
          %443 = vst [vmem:[%s433 + $0x28] sm:$0x77] 0.0
          %444 = vst [vmem:[%s433 + $0x30] sm:$0x77] 0.0
          %445 = vst [vmem:[%s433 + $0x38] sm:$0x77] 0.0
        $region68: #{tpu_custom_call.1} parent=43 // pred_fallthru
          _
        %v446 = vld [vmem:[%s349] sm:$0xff]
        %v447 = vld [vmem:[%s349 + $0x8] sm:$0xff]
        %v448 = vld [vmem:[%s349 + $0x10] sm:$0xff]
        %v449 = vld [vmem:[%s349 + $0x18] sm:$0xff]
        %v450 = vld [vmem:[%s349 + $0x20] sm:$0xff]
        %v451 = vld [vmem:[%s349 + $0x28] sm:$0xff]
        %v452 = vld [vmem:[%s349 + $0x30] sm:$0xff]
        %v453 = vld [vmem:[%s349 + $0x38] sm:$0xff]
        %v454 = vunpack.c.l.bf16 %v446
        %v455 = vunpack.c.h.bf16 %v446
        %v456 = vunpack.c.l.bf16 %v447
        %v457 = vunpack.c.h.bf16 %v447
        %v458 = vunpack.c.l.bf16 %v448
        %v459 = vunpack.c.h.bf16 %v448
        %v460 = vunpack.c.l.bf16 %v449
        %v461 = vunpack.c.h.bf16 %v449
        %v462 = vunpack.c.l.bf16 %v450
        %v463 = vunpack.c.h.bf16 %v450
        %v464 = vunpack.c.l.bf16 %v451
        %v465 = vunpack.c.h.bf16 %v451
        %v466 = vunpack.c.l.bf16 %v452
        %v467 = vunpack.c.h.bf16 %v452
        %v468 = vunpack.c.l.bf16 %v453
        %v469 = vunpack.c.h.bf16 %v453
        %v470 = vld [vmem:[%s358] sm:$0xff]
        %v471 = vld [vmem:[%s358 + $0x8] sm:$0xff]
        %v472 = vld [vmem:[%s367] sm:$0xff]
        %v473 = vld [vmem:[%s367 + $0x8] sm:$0xff]
        %v474 = vld [vmem:[%s367 + $0x10] sm:$0xff]
        %v475 = vld [vmem:[%s367 + $0x18] sm:$0xff]
        %v476 = vunpack.c.l.bf16 %v472
        %v477 = vunpack.c.h.bf16 %v472
        %v478 = vunpack.c.l.bf16 %v473
        %v479 = vunpack.c.h.bf16 %v473
        %v480 = vunpack.c.l.bf16 %v474
        %v481 = vunpack.c.h.bf16 %v474
        %v482 = vunpack.c.l.bf16 %v475
        %v483 = vunpack.c.h.bf16 %v475
        %v484 = vld [vmem:[%s376] sm:$0xff]
        %v485 = vld [vmem:[%s376 + $0x8] sm:$0xff]
        %v486 = vld [vmem:[%s376 + $0x10] sm:$0xff]
        %v487 = vld [vmem:[%s376 + $0x18] sm:$0xff]
        %v488 = vunpack.c.l.bf16 %v484
        %v489 = vunpack.c.h.bf16 %v484
        %v490 = vunpack.c.l.bf16 %v485
        %v491 = vunpack.c.h.bf16 %v485
        %v492 = vunpack.c.l.bf16 %v486
        %v493 = vunpack.c.h.bf16 %v486
        %v494 = vunpack.c.l.bf16 %v487
        %v495 = vunpack.c.h.bf16 %v487
        %v496 = vld [vmem:[#allocation9] sm:$0xff]
        %v497 = vld [vmem:[#allocation9 + $0x8] sm:$0xff]
        %v498 = vld [vmem:[#allocation9 + $0x10] sm:$0xff]
        %v499 = vld [vmem:[#allocation9 + $0x18] sm:$0xff]
        %v500 = vld [vmem:[#allocation9 + $0x20] sm:$0xff]
        %v501 = vld [vmem:[#allocation9 + $0x28] sm:$0xff]
        %v502 = vld [vmem:[#allocation9 + $0x30] sm:$0xff]
        %v503 = vld [vmem:[#allocation9 + $0x38] sm:$0xff]
        %v504 = vld [vmem:[%s5] sm:$0xff]
        %v505 = vrot.slane %v454, 4
        %v506 = vmax.f32 %v454, %v505
        %v507 = vrot.slane %v506, 2
        %v508 = vmax.f32 %v506, %v507
        %v509 = vrot.slane %v508, 1
        %v510 = vmax.f32 %v508, %v509
        %v511 = vrot.slane %v455, 4
        %v512 = vmax.f32 %v455, %v511
        %v513 = vrot.slane %v512, 2
        %v514 = vmax.f32 %v512, %v513
        %v515 = vrot.slane %v514, 1
        %v516 = vmax.f32 %v514, %v515
        %v517 = vrot.slane %v456, 4
        %v518 = vmax.f32 %v456, %v517
        %v519 = vrot.slane %v518, 2
        %v520 = vmax.f32 %v518, %v519
        %v521 = vrot.slane %v520, 1
        %v522 = vmax.f32 %v520, %v521
        %v523 = vrot.slane %v457, 4
        %v524 = vmax.f32 %v457, %v523
        %v525 = vrot.slane %v524, 2
        %v526 = vmax.f32 %v524, %v525
        %v527 = vrot.slane %v526, 1
        %v528 = vmax.f32 %v526, %v527
        %v529 = vrot.slane %v458, 4
        %v530 = vmax.f32 %v458, %v529
        %v531 = vrot.slane %v530, 2
        %v532 = vmax.f32 %v530, %v531
        %v533 = vrot.slane %v532, 1
        %v534 = vmax.f32 %v532, %v533
        %v535 = vrot.slane %v459, 4
        %v536 = vmax.f32 %v459, %v535
        %v537 = vrot.slane %v536, 2
        %v538 = vmax.f32 %v536, %v537
        %v539 = vrot.slane %v538, 1
        %v540 = vmax.f32 %v538, %v539
        %v541 = vrot.slane %v460, 4
        %v542 = vmax.f32 %v460, %v541
        %v543 = vrot.slane %v542, 2
        %v544 = vmax.f32 %v542, %v543
        %v545 = vrot.slane %v544, 1
        %v546 = vmax.f32 %v544, %v545
        %v547 = vrot.slane %v461, 4
        %v548 = vmax.f32 %v461, %v547
        %v549 = vrot.slane %v548, 2
        %v550 = vmax.f32 %v548, %v549
        %v551 = vrot.slane %v550, 1
        %v552 = vmax.f32 %v550, %v551
        %v553 = vrot.slane %v462, 4
        %v554 = vmax.f32 %v462, %v553
        %v555 = vrot.slane %v554, 2
        %v556 = vmax.f32 %v554, %v555
        %v557 = vrot.slane %v556, 1
        %v558 = vmax.f32 %v556, %v557
        %v559 = vrot.slane %v463, 4
        %v560 = vmax.f32 %v463, %v559
        %v561 = vrot.slane %v560, 2
        %v562 = vmax.f32 %v560, %v561
        %v563 = vrot.slane %v562, 1
        %v564 = vmax.f32 %v562, %v563
        %v565 = vrot.slane %v464, 4
        %v566 = vmax.f32 %v464, %v565
        %v567 = vrot.slane %v566, 2
        %v568 = vmax.f32 %v566, %v567
        %v569 = vrot.slane %v568, 1
        %v570 = vmax.f32 %v568, %v569
        %v571 = vrot.slane %v465, 4
        %v572 = vmax.f32 %v465, %v571
        %v573 = vrot.slane %v572, 2
        %v574 = vmax.f32 %v572, %v573
        %v575 = vrot.slane %v574, 1
        %v576 = vmax.f32 %v574, %v575
        %v577 = vrot.slane %v466, 4
        %v578 = vmax.f32 %v466, %v577
        %v579 = vrot.slane %v578, 2
        %v580 = vmax.f32 %v578, %v579
        %v581 = vrot.slane %v580, 1
        %v582 = vmax.f32 %v580, %v581
        %v583 = vrot.slane %v467, 4
        %v584 = vmax.f32 %v467, %v583
        %v585 = vrot.slane %v584, 2
        %v586 = vmax.f32 %v584, %v585
        %v587 = vrot.slane %v586, 1
        %v588 = vmax.f32 %v586, %v587
        %v589 = vrot.slane %v468, 4
        %v590 = vmax.f32 %v468, %v589
        %v591 = vrot.slane %v590, 2
        %v592 = vmax.f32 %v590, %v591
        %v593 = vrot.slane %v592, 1
        %v594 = vmax.f32 %v592, %v593
        %v595 = vrot.slane %v469, 4
        %v596 = vmax.f32 %v469, %v595
        %v597 = vrot.slane %v596, 2
        %v598 = vmax.f32 %v596, %v597
        %v599 = vrot.slane %v598, 1
        %v600 = vmax.f32 %v598, %v599
        %v601 = vsub.f32 %v454, %v510
        %v602 = vsub.f32 %v455, %v516
        %v603 = vsub.f32 %v456, %v522
        %v604 = vsub.f32 %v457, %v528
        %v605 = vsub.f32 %v458, %v534
        %v606 = vsub.f32 %v459, %v540
        %v607 = vsub.f32 %v460, %v546
        %v608 = vsub.f32 %v461, %v552
        %v609 = vsub.f32 %v462, %v558
        %v610 = vsub.f32 %v463, %v564
        %v611 = vsub.f32 %v464, %v570
        %v612 = vsub.f32 %v465, %v576
        %v613 = vsub.f32 %v466, %v582
        %v614 = vsub.f32 %v467, %v588
        %v615 = vsub.f32 %v468, %v594
        %v616 = vsub.f32 %v469, %v600
        %v617 = vmul.f32 %v601, 1.442695
        %v618 = vpow.pop %v617
        %v619 = vmul.f32 %v602, 1.442695
        %v620 = vpow.pop %v619
        %v621 = vmul.f32 %v603, 1.442695
        %v622 = vpow.pop %v621
        %v623 = vmul.f32 %v604, 1.442695
        %v624 = vpow.pop %v623
        %v625 = vmul.f32 %v605, 1.442695
        %v626 = vpow.pop %v625
        %v627 = vmul.f32 %v606, 1.442695
        %v628 = vpow.pop %v627
        %v629 = vmul.f32 %v607, 1.442695
        %v630 = vpow.pop %v629
        %v631 = vmul.f32 %v608, 1.442695
        %v632 = vpow.pop %v631
        %v633 = vmul.f32 %v609, 1.442695
        %v634 = vpow.pop %v633
        %v635 = vmul.f32 %v610, 1.442695
        %v636 = vpow.pop %v635
        %v637 = vmul.f32 %v611, 1.442695
        %v638 = vpow.pop %v637
        %v639 = vmul.f32 %v612, 1.442695
        %v640 = vpow.pop %v639
        %v641 = vmul.f32 %v613, 1.442695
        %v642 = vpow.pop %v641
        %v643 = vmul.f32 %v614, 1.442695
        %v644 = vpow.pop %v643
        %v645 = vmul.f32 %v615, 1.442695
        %v646 = vpow.pop %v645
        %v647 = vmul.f32 %v616, 1.442695
        %v648 = vpow.pop %v647
        %v649 = vrot.slane %v618, 4
        %v650 = vadd.f32 %v618, %v649
        %v651 = vrot.slane %v650, 2
        %v652 = vadd.f32 %v650, %v651
        %v653 = vrot.slane %v652, 1
        %v654 = vadd.f32 %v652, %v653
        %v655 = vrot.slane %v620, 4
        %v656 = vadd.f32 %v620, %v655
        %v657 = vrot.slane %v656, 2
        %v658 = vadd.f32 %v656, %v657
        %v659 = vrot.slane %v658, 1
        %v660 = vadd.f32 %v658, %v659
        %v661 = vrot.slane %v622, 4
        %v662 = vadd.f32 %v622, %v661
        %v663 = vrot.slane %v662, 2
        %v664 = vadd.f32 %v662, %v663
        %v665 = vrot.slane %v664, 1
        %v666 = vadd.f32 %v664, %v665
        %v667 = vrot.slane %v624, 4
        %v668 = vadd.f32 %v624, %v667
        %v669 = vrot.slane %v668, 2
        %v670 = vadd.f32 %v668, %v669
        %v671 = vrot.slane %v670, 1
        %v672 = vadd.f32 %v670, %v671
        %v673 = vrot.slane %v626, 4
        %v674 = vadd.f32 %v626, %v673
        %v675 = vrot.slane %v674, 2
        %v676 = vadd.f32 %v674, %v675
        %v677 = vrot.slane %v676, 1
        %v678 = vadd.f32 %v676, %v677
        %v679 = vrot.slane %v628, 4
        %v680 = vadd.f32 %v628, %v679
        %v681 = vrot.slane %v680, 2
        %v682 = vadd.f32 %v680, %v681
        %v683 = vrot.slane %v682, 1
        %v684 = vadd.f32 %v682, %v683
        %v685 = vrot.slane %v630, 4
        %v686 = vadd.f32 %v630, %v685
        %v687 = vrot.slane %v686, 2
        %v688 = vadd.f32 %v686, %v687
        %v689 = vrot.slane %v688, 1
        %v690 = vadd.f32 %v688, %v689
        %v691 = vrot.slane %v632, 4
        %v692 = vadd.f32 %v632, %v691
        %v693 = vrot.slane %v692, 2
        %v694 = vadd.f32 %v692, %v693
        %v695 = vrot.slane %v694, 1
        %v696 = vadd.f32 %v694, %v695
        %v697 = vrot.slane %v634, 4
        %v698 = vadd.f32 %v634, %v697
        %v699 = vrot.slane %v698, 2
        %v700 = vadd.f32 %v698, %v699
        %v701 = vrot.slane %v700, 1
        %v702 = vadd.f32 %v700, %v701
        %v703 = vrot.slane %v636, 4
        %v704 = vadd.f32 %v636, %v703
        %v705 = vrot.slane %v704, 2
        %v706 = vadd.f32 %v704, %v705
        %v707 = vrot.slane %v706, 1
        %v708 = vadd.f32 %v706, %v707
        %v709 = vrot.slane %v638, 4
        %v710 = vadd.f32 %v638, %v709
        %v711 = vrot.slane %v710, 2
        %v712 = vadd.f32 %v710, %v711
        %v713 = vrot.slane %v712, 1
        %v714 = vadd.f32 %v712, %v713
        %v715 = vrot.slane %v640, 4
        %v716 = vadd.f32 %v640, %v715
        %v717 = vrot.slane %v716, 2
        %v718 = vadd.f32 %v716, %v717
        %v719 = vrot.slane %v718, 1
        %v720 = vadd.f32 %v718, %v719
        %v721 = vrot.slane %v642, 4
        %v722 = vadd.f32 %v642, %v721
        %v723 = vrot.slane %v722, 2
        %v724 = vadd.f32 %v722, %v723
        %v725 = vrot.slane %v724, 1
        %v726 = vadd.f32 %v724, %v725
        %v727 = vrot.slane %v644, 4
        %v728 = vadd.f32 %v644, %v727
        %v729 = vrot.slane %v728, 2
        %v730 = vadd.f32 %v728, %v729
        %v731 = vrot.slane %v730, 1
        %v732 = vadd.f32 %v730, %v731
        %v733 = vrot.slane %v646, 4
        %v734 = vadd.f32 %v646, %v733
        %v735 = vrot.slane %v734, 2
        %v736 = vadd.f32 %v734, %v735
        %v737 = vrot.slane %v736, 1
        %v738 = vadd.f32 %v736, %v737
        %v739 = vrot.slane %v648, 4
        %v740 = vadd.f32 %v648, %v739
        %v741 = vrot.slane %v740, 2
        %v742 = vadd.f32 %v740, %v741
        %v743 = vrot.slane %v742, 1
        %v744 = vadd.f32 %v742, %v743
        %v745 = vlog2.pop %v654
        %v746 = vmul.f32 %v745, 0.6931472
        %v747 = vlog2.pop %v660
        %v748 = vmul.f32 %v747, 0.6931472
        %v749 = vlog2.pop %v666
        %v750 = vmul.f32 %v749, 0.6931472
        %v751 = vlog2.pop %v672
        %v752 = vmul.f32 %v751, 0.6931472
        %v753 = vlog2.pop %v678
        %v754 = vmul.f32 %v753, 0.6931472
        %v755 = vlog2.pop %v684
        %v756 = vmul.f32 %v755, 0.6931472
        %v757 = vlog2.pop %v690
        %v758 = vmul.f32 %v757, 0.6931472
        %v759 = vlog2.pop %v696
        %v760 = vmul.f32 %v759, 0.6931472
        %v761 = vlog2.pop %v702
        %v762 = vmul.f32 %v761, 0.6931472
        %v763 = vlog2.pop %v708
        %v764 = vmul.f32 %v763, 0.6931472
        %v765 = vlog2.pop %v714
        %v766 = vmul.f32 %v765, 0.6931472
        %v767 = vlog2.pop %v720
        %v768 = vmul.f32 %v767, 0.6931472
        %v769 = vlog2.pop %v726
        %v770 = vmul.f32 %v769, 0.6931472
        %v771 = vlog2.pop %v732
        %v772 = vmul.f32 %v771, 0.6931472
        %v773 = vlog2.pop %v738
        %v774 = vmul.f32 %v773, 0.6931472
        %v775 = vlog2.pop %v744
        %v776 = vmul.f32 %v775, 0.6931472
        %v777 = vlaneseq
        %v778 = vshrl.u32 %v777, 7
        %v779 = vlaneseq
        %v780 = vshrl.u32 %v779, 7
        %v781 = vsub.s32 0, %v780
        %v782 = vrot.slane %v470, %v781
        %v783 = vlaneseq
        %v784 = vshrl.u32 %v783, 7
        %v785 = vsub.s32 1, %v784
        %v786 = vrot.slane %v470, %v785
        %v787 = vlaneseq
        %v788 = vshrl.u32 %v787, 7
        %v789 = vsub.s32 2, %v788
        %v790 = vrot.slane %v470, %v789
        %v791 = vlaneseq
        %v792 = vshrl.u32 %v791, 7
        %v793 = vsub.s32 3, %v792
        %v794 = vrot.slane %v470, %v793
        %v795 = vlaneseq
        %v796 = vshrl.u32 %v795, 7
        %v797 = vsub.s32 4, %v796
        %v798 = vrot.slane %v470, %v797
        %v799 = vlaneseq
        %v800 = vshrl.u32 %v799, 7
        %v801 = vsub.s32 5, %v800
        %v802 = vrot.slane %v470, %v801
        %v803 = vlaneseq
        %v804 = vshrl.u32 %v803, 7
        %v805 = vsub.s32 6, %v804
        %v806 = vrot.slane %v470, %v805
        %v807 = vlaneseq
        %v808 = vshrl.u32 %v807, 7
        %v809 = vsub.s32 7, %v808
        %v810 = vrot.slane %v470, %v809
        %v811 = vlaneseq
        %v812 = vshrl.u32 %v811, 7
        %v813 = vsub.s32 0, %v812
        %v814 = vrot.slane %v471, %v813
        %v815 = vlaneseq
        %v816 = vshrl.u32 %v815, 7
        %v817 = vsub.s32 1, %v816
        %v818 = vrot.slane %v471, %v817
        %v819 = vlaneseq
        %v820 = vshrl.u32 %v819, 7
        %v821 = vsub.s32 2, %v820
        %v822 = vrot.slane %v471, %v821
        %v823 = vlaneseq
        %v824 = vshrl.u32 %v823, 7
        %v825 = vsub.s32 3, %v824
        %v826 = vrot.slane %v471, %v825
        %v827 = vlaneseq
        %v828 = vshrl.u32 %v827, 7
        %v829 = vsub.s32 4, %v828
        %v830 = vrot.slane %v471, %v829
        %v831 = vlaneseq
        %v832 = vshrl.u32 %v831, 7
        %v833 = vsub.s32 5, %v832
        %v834 = vrot.slane %v471, %v833
        %v835 = vlaneseq
        %v836 = vshrl.u32 %v835, 7
        %v837 = vsub.s32 6, %v836
        %v838 = vrot.slane %v471, %v837
        %v839 = vlaneseq
        %v840 = vshrl.u32 %v839, 7
        %v841 = vsub.s32 7, %v840
        %v842 = vrot.slane %v471, %v841
        %vm843 = vcmp.eq.s32.totalorder %v778, %v782
        %vm844 = vcmp.eq.s32.totalorder %v778, %v786
        %vm845 = vcmp.eq.s32.totalorder %v778, %v790
        %vm846 = vcmp.eq.s32.totalorder %v778, %v794
        %vm847 = vcmp.eq.s32.totalorder %v778, %v798
        %vm848 = vcmp.eq.s32.totalorder %v778, %v802
        %vm849 = vcmp.eq.s32.totalorder %v778, %v806
        %vm850 = vcmp.eq.s32.totalorder %v778, %v810
        %vm851 = vcmp.eq.s32.totalorder %v778, %v814
        %vm852 = vcmp.eq.s32.totalorder %v778, %v818
        %vm853 = vcmp.eq.s32.totalorder %v778, %v822
        %vm854 = vcmp.eq.s32.totalorder %v778, %v826
        %vm855 = vcmp.eq.s32.totalorder %v778, %v830
        %vm856 = vcmp.eq.s32.totalorder %v778, %v834
        %vm857 = vcmp.eq.s32.totalorder %v778, %v838
        %vm858 = vcmp.eq.s32.totalorder %v778, %v842
        %v859 = vsel %vm843, %v601, 0.0
        %v860 = vsel %vm844, %v602, 0.0
        %v861 = vsel %vm845, %v603, 0.0
        %v862 = vsel %vm846, %v604, 0.0
        %v863 = vsel %vm847, %v605, 0.0
        %v864 = vsel %vm848, %v606, 0.0
        %v865 = vsel %vm849, %v607, 0.0
        %v866 = vsel %vm850, %v608, 0.0
        %v867 = vsel %vm851, %v609, 0.0
        %v868 = vsel %vm852, %v610, 0.0
        %v869 = vsel %vm853, %v611, 0.0
        %v870 = vsel %vm854, %v612, 0.0
        %v871 = vsel %vm855, %v613, 0.0
        %v872 = vsel %vm856, %v614, 0.0
        %v873 = vsel %vm857, %v615, 0.0
        %v874 = vsel %vm858, %v616, 0.0
        %v875 = vrot.slane %v859, 4
        %v876 = vadd.f32 %v859, %v875
        %v877 = vrot.slane %v876, 2
        %v878 = vadd.f32 %v876, %v877
        %v879 = vrot.slane %v878, 1
        %v880 = vadd.f32 %v878, %v879
        %v881 = vrot.slane %v860, 4
        %v882 = vadd.f32 %v860, %v881
        %v883 = vrot.slane %v882, 2
        %v884 = vadd.f32 %v882, %v883
        %v885 = vrot.slane %v884, 1
        %v886 = vadd.f32 %v884, %v885
        %v887 = vrot.slane %v861, 4
        %v888 = vadd.f32 %v861, %v887
        %v889 = vrot.slane %v888, 2
        %v890 = vadd.f32 %v888, %v889
        %v891 = vrot.slane %v890, 1
        %v892 = vadd.f32 %v890, %v891
        %v893 = vrot.slane %v862, 4
        %v894 = vadd.f32 %v862, %v893
        %v895 = vrot.slane %v894, 2
        %v896 = vadd.f32 %v894, %v895
        %v897 = vrot.slane %v896, 1
        %v898 = vadd.f32 %v896, %v897
        %v899 = vrot.slane %v863, 4
        %v900 = vadd.f32 %v863, %v899
        %v901 = vrot.slane %v900, 2
        %v902 = vadd.f32 %v900, %v901
        %v903 = vrot.slane %v902, 1
        %v904 = vadd.f32 %v902, %v903
        %v905 = vrot.slane %v864, 4
        %v906 = vadd.f32 %v864, %v905
        %v907 = vrot.slane %v906, 2
        %v908 = vadd.f32 %v906, %v907
        %v909 = vrot.slane %v908, 1
        %v910 = vadd.f32 %v908, %v909
        %v911 = vrot.slane %v865, 4
        %v912 = vadd.f32 %v865, %v911
        %v913 = vrot.slane %v912, 2
        %v914 = vadd.f32 %v912, %v913
        %v915 = vrot.slane %v914, 1
        %v916 = vadd.f32 %v914, %v915
        %v917 = vrot.slane %v866, 4
        %v918 = vadd.f32 %v866, %v917
        %v919 = vrot.slane %v918, 2
        %v920 = vadd.f32 %v918, %v919
        %v921 = vrot.slane %v920, 1
        %v922 = vadd.f32 %v920, %v921
        %v923 = vrot.slane %v867, 4
        %v924 = vadd.f32 %v867, %v923
        %v925 = vrot.slane %v924, 2
        %v926 = vadd.f32 %v924, %v925
        %v927 = vrot.slane %v926, 1
        %v928 = vadd.f32 %v926, %v927
        %v929 = vrot.slane %v868, 4
        %v930 = vadd.f32 %v868, %v929
        %v931 = vrot.slane %v930, 2
        %v932 = vadd.f32 %v930, %v931
        %v933 = vrot.slane %v932, 1
        %v934 = vadd.f32 %v932, %v933
        %v935 = vrot.slane %v869, 4
        %v936 = vadd.f32 %v869, %v935
        %v937 = vrot.slane %v936, 2
        %v938 = vadd.f32 %v936, %v937
        %v939 = vrot.slane %v938, 1
        %v940 = vadd.f32 %v938, %v939
        %v941 = vrot.slane %v870, 4
        %v942 = vadd.f32 %v870, %v941
        %v943 = vrot.slane %v942, 2
        %v944 = vadd.f32 %v942, %v943
        %v945 = vrot.slane %v944, 1
        %v946 = vadd.f32 %v944, %v945
        %v947 = vrot.slane %v871, 4
        %v948 = vadd.f32 %v871, %v947
        %v949 = vrot.slane %v948, 2
        %v950 = vadd.f32 %v948, %v949
        %v951 = vrot.slane %v950, 1
        %v952 = vadd.f32 %v950, %v951
        %v953 = vrot.slane %v872, 4
        %v954 = vadd.f32 %v872, %v953
        %v955 = vrot.slane %v954, 2
        %v956 = vadd.f32 %v954, %v955
        %v957 = vrot.slane %v956, 1
        %v958 = vadd.f32 %v956, %v957
        %v959 = vrot.slane %v873, 4
        %v960 = vadd.f32 %v873, %v959
        %v961 = vrot.slane %v960, 2
        %v962 = vadd.f32 %v960, %v961
        %v963 = vrot.slane %v962, 1
        %v964 = vadd.f32 %v962, %v963
        %v965 = vrot.slane %v874, 4
        %v966 = vadd.f32 %v874, %v965
        %v967 = vrot.slane %v966, 2
        %v968 = vadd.f32 %v966, %v967
        %v969 = vrot.slane %v968, 1
        %v970 = vadd.f32 %v968, %v969
        %972 = vset.pattern.permute.xlu0 0
        %973 = vperm.xlu0 %972, %v504
        %v974 = vpop.permute.xlu0 %973
        %v976 = vsel %vm843, %v974, 0.0
        %v977 = vsel %vm844, %v974, 0.0
        %v978 = vsel %vm845, %v974, 0.0
        %v979 = vsel %vm846, %v974, 0.0
        %v980 = vsel %vm847, %v974, 0.0
        %v981 = vsel %vm848, %v974, 0.0
        %v982 = vsel %vm849, %v974, 0.0
        %v983 = vsel %vm850, %v974, 0.0
        %v984 = vsel %vm851, %v974, 0.0
        %v985 = vsel %vm852, %v974, 0.0
        %v986 = vsel %vm853, %v974, 0.0
        %v987 = vsel %vm854, %v974, 0.0
        %v988 = vsel %vm855, %v974, 0.0
        %v989 = vsel %vm856, %v974, 0.0
        %v990 = vsel %vm857, %v974, 0.0
        %v991 = vsel %vm858, %v974, 0.0
        %v992 = vrot.slane %v976, 4
        %v993 = vadd.f32 %v976, %v992
        %v994 = vrot.slane %v993, 2
        %v995 = vadd.f32 %v993, %v994
        %v996 = vrot.slane %v995, 1
        %v997 = vadd.f32 %v995, %v996
        %v998 = vrot.slane %v977, 4
        %v999 = vadd.f32 %v977, %v998
        %v1000 = vrot.slane %v999, 2
        %v1001 = vadd.f32 %v999, %v1000
        %v1002 = vrot.slane %v1001, 1
        %v1003 = vadd.f32 %v1001, %v1002
        %v1004 = vrot.slane %v978, 4
        %v1005 = vadd.f32 %v978, %v1004
        %v1006 = vrot.slane %v1005, 2
        %v1007 = vadd.f32 %v1005, %v1006
        %v1008 = vrot.slane %v1007, 1
        %v1009 = vadd.f32 %v1007, %v1008
        %v1010 = vrot.slane %v979, 4
        %v1011 = vadd.f32 %v979, %v1010
        %v1012 = vrot.slane %v1011, 2
        %v1013 = vadd.f32 %v1011, %v1012
        %v1014 = vrot.slane %v1013, 1
        %v1015 = vadd.f32 %v1013, %v1014
        %v1016 = vrot.slane %v980, 4
        %v1017 = vadd.f32 %v980, %v1016
        %v1018 = vrot.slane %v1017, 2
        %v1019 = vadd.f32 %v1017, %v1018
        %v1020 = vrot.slane %v1019, 1
        %v1021 = vadd.f32 %v1019, %v1020
        %v1022 = vrot.slane %v981, 4
        %v1023 = vadd.f32 %v981, %v1022
        %v1024 = vrot.slane %v1023, 2
        %v1025 = vadd.f32 %v1023, %v1024
        %v1026 = vrot.slane %v1025, 1
        %v1027 = vadd.f32 %v1025, %v1026
        %v1028 = vrot.slane %v982, 4
        %v1029 = vadd.f32 %v982, %v1028
        %v1030 = vrot.slane %v1029, 2
        %v1031 = vadd.f32 %v1029, %v1030
        %v1032 = vrot.slane %v1031, 1
        %v1033 = vadd.f32 %v1031, %v1032
        %v1034 = vrot.slane %v983, 4
        %v1035 = vadd.f32 %v983, %v1034
        %v1036 = vrot.slane %v1035, 2
        %v1037 = vadd.f32 %v1035, %v1036
        %v1038 = vrot.slane %v1037, 1
        %v1039 = vadd.f32 %v1037, %v1038
        %v1040 = vrot.slane %v984, 4
        %v1041 = vadd.f32 %v984, %v1040
        %v1042 = vrot.slane %v1041, 2
        %v1043 = vadd.f32 %v1041, %v1042
        %v1044 = vrot.slane %v1043, 1
        %v1045 = vadd.f32 %v1043, %v1044
        %v1046 = vrot.slane %v985, 4
        %v1047 = vadd.f32 %v985, %v1046
        %v1048 = vrot.slane %v1047, 2
        %v1049 = vadd.f32 %v1047, %v1048
        %v1050 = vrot.slane %v1049, 1
        %v1051 = vadd.f32 %v1049, %v1050
        %v1052 = vrot.slane %v986, 4
        %v1053 = vadd.f32 %v986, %v1052
        %v1054 = vrot.slane %v1053, 2
        %v1055 = vadd.f32 %v1053, %v1054
        %v1056 = vrot.slane %v1055, 1
        %v1057 = vadd.f32 %v1055, %v1056
        %v1058 = vrot.slane %v987, 4
        %v1059 = vadd.f32 %v987, %v1058
        %v1060 = vrot.slane %v1059, 2
        %v1061 = vadd.f32 %v1059, %v1060
        %v1062 = vrot.slane %v1061, 1
        %v1063 = vadd.f32 %v1061, %v1062
        %v1064 = vrot.slane %v988, 4
        %v1065 = vadd.f32 %v988, %v1064
        %v1066 = vrot.slane %v1065, 2
        %v1067 = vadd.f32 %v1065, %v1066
        %v1068 = vrot.slane %v1067, 1
        %v1069 = vadd.f32 %v1067, %v1068
        %v1070 = vrot.slane %v989, 4
        %v1071 = vadd.f32 %v989, %v1070
        %v1072 = vrot.slane %v1071, 2
        %v1073 = vadd.f32 %v1071, %v1072
        %v1074 = vrot.slane %v1073, 1
        %v1075 = vadd.f32 %v1073, %v1074
        %v1076 = vrot.slane %v990, 4
        %v1077 = vadd.f32 %v990, %v1076
        %v1078 = vrot.slane %v1077, 2
        %v1079 = vadd.f32 %v1077, %v1078
        %v1080 = vrot.slane %v1079, 1
        %v1081 = vadd.f32 %v1079, %v1080
        %v1082 = vrot.slane %v991, 4
        %v1083 = vadd.f32 %v991, %v1082
        %v1084 = vrot.slane %v1083, 2
        %v1085 = vadd.f32 %v1083, %v1084
        %v1086 = vrot.slane %v1085, 1
        %v1087 = vadd.f32 %v1085, %v1086
        %v1088 = vsub.f32 %v880, %v746
        %v1089 = vsub.f32 %v886, %v748
        %v1090 = vsub.f32 %v892, %v750
        %v1091 = vsub.f32 %v898, %v752
        %v1092 = vsub.f32 %v904, %v754
        %v1093 = vsub.f32 %v910, %v756
        %v1094 = vsub.f32 %v916, %v758
        %v1095 = vsub.f32 %v922, %v760
        %v1096 = vsub.f32 %v928, %v762
        %v1097 = vsub.f32 %v934, %v764
        %v1098 = vsub.f32 %v940, %v766
        %v1099 = vsub.f32 %v946, %v768
        %v1100 = vsub.f32 %v952, %v770
        %v1101 = vsub.f32 %v958, %v772
        %v1102 = vsub.f32 %v964, %v774
        %v1103 = vsub.f32 %v970, %v776
        %v1104 = vmul.f32 %v1088, 1.442695
        %v1105 = vpow.pop %v1104
        %v1106 = vmul.f32 %v1089, 1.442695
        %v1107 = vpow.pop %v1106
        %v1108 = vmul.f32 %v1090, 1.442695
        %v1109 = vpow.pop %v1108
        %v1110 = vmul.f32 %v1091, 1.442695
        %v1111 = vpow.pop %v1110
        %v1112 = vmul.f32 %v1092, 1.442695
        %v1113 = vpow.pop %v1112
        %v1114 = vmul.f32 %v1093, 1.442695
        %v1115 = vpow.pop %v1114
        %v1116 = vmul.f32 %v1094, 1.442695
        %v1117 = vpow.pop %v1116
        %v1118 = vmul.f32 %v1095, 1.442695
        %v1119 = vpow.pop %v1118
        %v1120 = vmul.f32 %v1096, 1.442695
        %v1121 = vpow.pop %v1120
        %v1122 = vmul.f32 %v1097, 1.442695
        %v1123 = vpow.pop %v1122
        %v1124 = vmul.f32 %v1098, 1.442695
        %v1125 = vpow.pop %v1124
        %v1126 = vmul.f32 %v1099, 1.442695
        %v1127 = vpow.pop %v1126
        %v1128 = vmul.f32 %v1100, 1.442695
        %v1129 = vpow.pop %v1128
        %v1130 = vmul.f32 %v1101, 1.442695
        %v1131 = vpow.pop %v1130
        %v1132 = vmul.f32 %v1102, 1.442695
        %v1133 = vpow.pop %v1132
        %v1134 = vmul.f32 %v1103, 1.442695
        %v1135 = vpow.pop %v1134
        %v1136 = vsub.f32 1.0, %v1105
        %v1137 = vsub.f32 1.0, %v1107
        %v1138 = vsub.f32 1.0, %v1109
        %v1139 = vsub.f32 1.0, %v1111
        %v1140 = vsub.f32 1.0, %v1113
        %v1141 = vsub.f32 1.0, %v1115
        %v1142 = vsub.f32 1.0, %v1117
        %v1143 = vsub.f32 1.0, %v1119
        %v1144 = vsub.f32 1.0, %v1121
        %v1145 = vsub.f32 1.0, %v1123
        %v1146 = vsub.f32 1.0, %v1125
        %v1147 = vsub.f32 1.0, %v1127
        %v1148 = vsub.f32 1.0, %v1129
        %v1149 = vsub.f32 1.0, %v1131
        %v1150 = vsub.f32 1.0, %v1133
        %v1151 = vsub.f32 1.0, %v1135
        %v1152 = vmul.f32 %v1136, %v1136
        %v1153 = vmul.f32 %v1137, %v1137
        %v1154 = vmul.f32 %v1138, %v1138
        %v1155 = vmul.f32 %v1139, %v1139
        %v1156 = vmul.f32 %v1140, %v1140
        %v1157 = vmul.f32 %v1141, %v1141
        %v1158 = vmul.f32 %v1142, %v1142
        %v1159 = vmul.f32 %v1143, %v1143
        %v1160 = vmul.f32 %v1144, %v1144
        %v1161 = vmul.f32 %v1145, %v1145
        %v1162 = vmul.f32 %v1146, %v1146
        %v1163 = vmul.f32 %v1147, %v1147
        %v1164 = vmul.f32 %v1148, %v1148
        %v1165 = vmul.f32 %v1149, %v1149
        %v1166 = vmul.f32 %v1150, %v1150
        %v1167 = vmul.f32 %v1151, %v1151
        %v1168 = vsub.f32 0.0, %v1152
        %v1169 = vsub.f32 0.0, %v1153
        %v1170 = vsub.f32 0.0, %v1154
        %v1171 = vsub.f32 0.0, %v1155
        %v1172 = vsub.f32 0.0, %v1156
        %v1173 = vsub.f32 0.0, %v1157
        %v1174 = vsub.f32 0.0, %v1158
        %v1175 = vsub.f32 0.0, %v1159
        %v1176 = vsub.f32 0.0, %v1160
        %v1177 = vsub.f32 0.0, %v1161
        %v1178 = vsub.f32 0.0, %v1162
        %v1179 = vsub.f32 0.0, %v1163
        %v1180 = vsub.f32 0.0, %v1164
        %v1181 = vsub.f32 0.0, %v1165
        %v1182 = vsub.f32 0.0, %v1166
        %v1183 = vsub.f32 0.0, %v1167
        %v1184 = vmul.f32 %v997, %v1168
        %v1185 = vmul.f32 %v1003, %v1169
        %v1186 = vmul.f32 %v1009, %v1170
        %v1187 = vmul.f32 %v1015, %v1171
        %v1188 = vmul.f32 %v1021, %v1172
        %v1189 = vmul.f32 %v1027, %v1173
        %v1190 = vmul.f32 %v1033, %v1174
        %v1191 = vmul.f32 %v1039, %v1175
        %v1192 = vmul.f32 %v1045, %v1176
        %v1193 = vmul.f32 %v1051, %v1177
        %v1194 = vmul.f32 %v1057, %v1178
        %v1195 = vmul.f32 %v1063, %v1179
        %v1196 = vmul.f32 %v1069, %v1180
        %v1197 = vmul.f32 %v1075, %v1181
        %v1198 = vmul.f32 %v1081, %v1182
        %v1199 = vmul.f32 %v1087, %v1183
        %v1200 = vmul.f32 %v1184, %v1088
        %v1201 = vmul.f32 %v1185, %v1089
        %v1202 = vmul.f32 %v1186, %v1090
        %v1203 = vmul.f32 %v1187, %v1091
        %v1204 = vmul.f32 %v1188, %v1092
        %v1205 = vmul.f32 %v1189, %v1093
        %v1206 = vmul.f32 %v1190, %v1094
        %v1207 = vmul.f32 %v1191, %v1095
        %v1208 = vmul.f32 %v1192, %v1096
        %v1209 = vmul.f32 %v1193, %v1097
        %v1210 = vmul.f32 %v1194, %v1098
        %v1211 = vmul.f32 %v1195, %v1099
        %v1212 = vmul.f32 %v1196, %v1100
        %v1213 = vmul.f32 %v1197, %v1101
        %v1214 = vmul.f32 %v1198, %v1102
        %v1215 = vmul.f32 %v1199, %v1103
        %vm1216 = vcmp.gt.s32.totalorder %v470, 0
        %vm1217 = vcmp.gt.s32.totalorder %v471, 0
        %v1218 = vsub.f32 %v476, %v496
        %v1219 = vsub.f32 %v477, %v497
        %v1220 = vsub.f32 %v478, %v498
        %v1221 = vsub.f32 %v479, %v499
        %v1222 = vsub.f32 %v480, %v500
        %v1223 = vsub.f32 %v481, %v501
        %v1224 = vsub.f32 %v482, %v502
        %v1225 = vsub.f32 %v483, %v503
        %v1226 = vmul.f32 %v1218, 10.0
        %v1227 = vmul.f32 %v1219, 10.0
        %v1228 = vmul.f32 %v1220, 10.0
        %v1229 = vmul.f32 %v1221, 10.0
        %v1230 = vmul.f32 %v1222, 10.0
        %v1231 = vmul.f32 %v1223, 10.0
        %v1232 = vmul.f32 %v1224, 10.0
        %v1233 = vmul.f32 %v1225, 10.0
        %v1242 = vrot.slane %v496, 6
        %v1243 = vrot.slane %v1242, 4
        %v1244 = vrot.slane %v497, 6
        %v1245 = vrot.slane %v1244, 4
        %v1246 = vrot.slane %v498, 6
        %v1247 = vrot.slane %v1246, 4
        %v1248 = vrot.slane %v499, 6
        %v1249 = vrot.slane %v1248, 4
        %v1250 = vrot.slane %v500, 6
        %v1251 = vrot.slane %v1250, 4
        %v1252 = vrot.slane %v501, 6
        %v1253 = vrot.slane %v1252, 4
        %v1254 = vrot.slane %v502, 6
        %v1255 = vrot.slane %v1254, 4
        %v1256 = vrot.slane %v503, 6
        %v1257 = vrot.slane %v1256, 4
        %v1266 = vrcp.pop %v1243
        %v1267 = vmul.f32 %v1226, %v1266
        %v1268 = vrcp.pop %v1245
        %v1269 = vmul.f32 %v1227, %v1268
        %v1270 = vrcp.pop %v1247
        %v1271 = vmul.f32 %v1228, %v1270
        %v1272 = vrcp.pop %v1249
        %v1273 = vmul.f32 %v1229, %v1272
        %v1274 = vrcp.pop %v1251
        %v1275 = vmul.f32 %v1230, %v1274
        %v1276 = vrcp.pop %v1253
        %v1277 = vmul.f32 %v1231, %v1276
        %v1278 = vrcp.pop %v1255
        %v1279 = vmul.f32 %v1232, %v1278
        %v1280 = vrcp.pop %v1257
        %v1281 = vmul.f32 %v1233, %v1280
        %v1282 = vmax.f32 %v476, 1e-12
        %v1283 = vmax.f32 %v477, 1e-12
        %v1284 = vmax.f32 %v478, 1e-12
        %v1285 = vmax.f32 %v479, 1e-12
        %v1286 = vmax.f32 %v480, 1e-12
        %v1287 = vmax.f32 %v481, 1e-12
        %v1288 = vmax.f32 %v482, 1e-12
        %v1289 = vmax.f32 %v483, 1e-12
        %v1290 = vrcp.pop %v496
        %v1291 = vmul.f32 %v1282, %v1290
        %v1292 = vrcp.pop %v497
        %v1293 = vmul.f32 %v1283, %v1292
        %v1294 = vrcp.pop %v498
        %v1295 = vmul.f32 %v1284, %v1294
        %v1296 = vrcp.pop %v499
        %v1297 = vmul.f32 %v1285, %v1296
        %v1298 = vrcp.pop %v500
        %v1299 = vmul.f32 %v1286, %v1298
        %v1300 = vrcp.pop %v501
        %v1301 = vmul.f32 %v1287, %v1300
        %v1302 = vrcp.pop %v502
        %v1303 = vmul.f32 %v1288, %v1302
        %v1304 = vrcp.pop %v503
        %v1305 = vmul.f32 %v1289, %v1304
        %v1306 = vlog2.pop %v1291
        %v1307 = vmul.f32 %v1306, 0.6931472
        %v1308 = vlog2.pop %v1293
        %v1309 = vmul.f32 %v1308, 0.6931472
        %v1310 = vlog2.pop %v1295
        %v1311 = vmul.f32 %v1310, 0.6931472
        %v1312 = vlog2.pop %v1297
        %v1313 = vmul.f32 %v1312, 0.6931472
        %v1314 = vlog2.pop %v1299
        %v1315 = vmul.f32 %v1314, 0.6931472
        %v1316 = vlog2.pop %v1301
        %v1317 = vmul.f32 %v1316, 0.6931472
        %v1318 = vlog2.pop %v1303
        %v1319 = vmul.f32 %v1318, 0.6931472
        %v1320 = vlog2.pop %v1305
        %v1321 = vmul.f32 %v1320, 0.6931472
        %v1322 = vmul.f32 %v1307, 5.0
        %v1323 = vmul.f32 %v1309, 5.0
        %v1324 = vmul.f32 %v1311, 5.0
        %v1325 = vmul.f32 %v1313, 5.0
        %v1326 = vmul.f32 %v1315, 5.0
        %v1327 = vmul.f32 %v1317, 5.0
        %v1328 = vmul.f32 %v1319, 5.0
        %v1329 = vmul.f32 %v1321, 5.0
        %v1338 = vcombine.high %v1267, %v1267
        %v1339 = vcombine.high %v1269, %v1269
        %v1340 = vcombine.high %v1271, %v1271
        %v1341 = vcombine.high %v1273, %v1273
        %v1342 = vcombine.high %v1275, %v1275
        %v1343 = vcombine.high %v1277, %v1277
        %v1344 = vcombine.high %v1279, %v1279
        %v1345 = vcombine.high %v1281, %v1281
        %v1362 = vcombine.high %v1322, %v1322
        %v1363 = vcombine.high %v1323, %v1323
        %v1364 = vcombine.high %v1324, %v1324
        %v1365 = vcombine.high %v1325, %v1325
        %v1366 = vcombine.high %v1326, %v1326
        %v1367 = vcombine.high %v1327, %v1327
        %v1368 = vcombine.high %v1328, %v1328
        %v1369 = vcombine.high %v1329, %v1329
        %vm1378 = vcmask 1041408
        %v1379 = vsel %vm1378, %v1267, %v1322
        %v1380 = vsel %vm1378, %v1338, %v1362
        %v1381 = vsel %vm1378, %v1269, %v1323
        %v1382 = vsel %vm1378, %v1339, %v1363
        %v1383 = vsel %vm1378, %v1271, %v1324
        %v1384 = vsel %vm1378, %v1340, %v1364
        %v1385 = vsel %vm1378, %v1273, %v1325
        %v1386 = vsel %vm1378, %v1341, %v1365
        %v1387 = vsel %vm1378, %v1275, %v1326
        %v1388 = vsel %vm1378, %v1342, %v1366
        %v1389 = vsel %vm1378, %v1277, %v1327
        %v1390 = vsel %vm1378, %v1343, %v1367
        %v1391 = vsel %vm1378, %v1279, %v1328
        %v1392 = vsel %vm1378, %v1344, %v1368
        %v1393 = vsel %vm1378, %v1281, %v1329
        %v1394 = vsel %vm1378, %v1345, %v1369
        %v1411 = vcombine.low %v1379, %v1380
        %v1412 = vcombine.low %v1381, %v1382
        %v1413 = vcombine.low %v1383, %v1384
        %v1414 = vcombine.low %v1385, %v1386
        %v1415 = vcombine.low %v1387, %v1388
        %v1416 = vcombine.low %v1389, %v1390
        %v1417 = vcombine.low %v1391, %v1392
        %v1418 = vcombine.low %v1393, %v1394
        %v1427 = vsub.f32 %v488, %v1411
        %v1428 = vsub.f32 %v489, %v1412
        %v1429 = vsub.f32 %v490, %v1413
        %v1430 = vsub.f32 %v491, %v1414
        %v1431 = vsub.f32 %v492, %v1415
        %v1432 = vsub.f32 %v493, %v1416
        %v1433 = vsub.f32 %v494, %v1417
        %v1434 = vsub.f32 %v495, %v1418
        %v1435 = vand.u32 2147483647, %v1427
        %v1436 = vand.u32 2147483647, %v1428
        %v1437 = vand.u32 2147483647, %v1429
        %v1438 = vand.u32 2147483647, %v1430
        %v1439 = vand.u32 2147483647, %v1431
        %v1440 = vand.u32 2147483647, %v1432
        %v1441 = vand.u32 2147483647, %v1433
        %v1442 = vand.u32 2147483647, %v1434
        %vm1443 = vcmp.lt.f32.partialorder %v1435, 1.0
        %vm1444 = vcmp.lt.f32.partialorder %v1436, 1.0
        %vm1445 = vcmp.lt.f32.partialorder %v1437, 1.0
        %vm1446 = vcmp.lt.f32.partialorder %v1438, 1.0
        %vm1447 = vcmp.lt.f32.partialorder %v1439, 1.0
        %vm1448 = vcmp.lt.f32.partialorder %v1440, 1.0
        %vm1449 = vcmp.lt.f32.partialorder %v1441, 1.0
        %vm1450 = vcmp.lt.f32.partialorder %v1442, 1.0
        %v1451 = vmul.f32 %v1435, 0.5
        %v1452 = vmul.f32 %v1436, 0.5
        %v1453 = vmul.f32 %v1437, 0.5
        %v1454 = vmul.f32 %v1438, 0.5
        %v1455 = vmul.f32 %v1439, 0.5
        %v1456 = vmul.f32 %v1440, 0.5
        %v1457 = vmul.f32 %v1441, 0.5
        %v1458 = vmul.f32 %v1442, 0.5
        %v1459 = vmul.f32 %v1451, %v1435
        %v1460 = vmul.f32 %v1452, %v1436
        %v1461 = vmul.f32 %v1453, %v1437
        %v1462 = vmul.f32 %v1454, %v1438
        %v1463 = vmul.f32 %v1455, %v1439
        %v1464 = vmul.f32 %v1456, %v1440
        %v1465 = vmul.f32 %v1457, %v1441
        %v1466 = vmul.f32 %v1458, %v1442
        %v1467 = vsub.f32 %v1435, 0.5
        %v1468 = vsub.f32 %v1436, 0.5
        %v1469 = vsub.f32 %v1437, 0.5
        %v1470 = vsub.f32 %v1438, 0.5
        %v1471 = vsub.f32 %v1439, 0.5
        %v1472 = vsub.f32 %v1440, 0.5
        %v1473 = vsub.f32 %v1441, 0.5
        %v1474 = vsub.f32 %v1442, 0.5
        %v1475 = vsel %vm1443, %v1459, %v1467
        %v1476 = vsel %vm1444, %v1460, %v1468
        %v1477 = vsel %vm1445, %v1461, %v1469
        %v1478 = vsel %vm1446, %v1462, %v1470
        %v1479 = vsel %vm1447, %v1463, %v1471
        %v1480 = vsel %vm1448, %v1464, %v1472
        %v1481 = vsel %vm1449, %v1465, %v1473
        %v1482 = vsel %vm1450, %v1466, %v1474
        %v1483 = vsel %vm1216, 1, 0
        %v1484 = vsel %vm1217, 1, 0
        %v1485 = vlaneseq
        %v1486 = vshrl.u32 %v1485, 7
        %v1487 = vsub.s32 0, %v1486
        %v1488 = vrot.slane %v1483, %v1487
        %v1489 = vlaneseq
        %v1490 = vshrl.u32 %v1489, 7
        %v1491 = vsub.s32 1, %v1490
        %v1492 = vrot.slane %v1483, %v1491
        %v1493 = vlaneseq
        %v1494 = vshrl.u32 %v1493, 7
        %v1495 = vsub.s32 2, %v1494
        %v1496 = vrot.slane %v1483, %v1495
        %v1497 = vlaneseq
        %v1498 = vshrl.u32 %v1497, 7
        %v1499 = vsub.s32 3, %v1498
        %v1500 = vrot.slane %v1483, %v1499
        %v1501 = vlaneseq
        %v1502 = vshrl.u32 %v1501, 7
        %v1503 = vsub.s32 4, %v1502
        %v1504 = vrot.slane %v1483, %v1503
        %v1505 = vlaneseq
        %v1506 = vshrl.u32 %v1505, 7
        %v1507 = vsub.s32 5, %v1506
        %v1508 = vrot.slane %v1483, %v1507
        %v1509 = vlaneseq
        %v1510 = vshrl.u32 %v1509, 7
        %v1511 = vsub.s32 6, %v1510
        %v1512 = vrot.slane %v1483, %v1511
        %v1513 = vlaneseq
        %v1514 = vshrl.u32 %v1513, 7
        %v1515 = vsub.s32 7, %v1514
        %v1516 = vrot.slane %v1483, %v1515
        %v1517 = vlaneseq
        %v1518 = vshrl.u32 %v1517, 7
        %v1519 = vsub.s32 0, %v1518
        %v1520 = vrot.slane %v1484, %v1519
        %v1521 = vlaneseq
        %v1522 = vshrl.u32 %v1521, 7
        %v1523 = vsub.s32 1, %v1522
        %v1524 = vrot.slane %v1484, %v1523
        %v1525 = vlaneseq
        %v1526 = vshrl.u32 %v1525, 7
        %v1527 = vsub.s32 2, %v1526
        %v1528 = vrot.slane %v1484, %v1527
        %v1529 = vlaneseq
        %v1530 = vshrl.u32 %v1529, 7
        %v1531 = vsub.s32 3, %v1530
        %v1532 = vrot.slane %v1484, %v1531
        %v1533 = vlaneseq
        %v1534 = vshrl.u32 %v1533, 7
        %v1535 = vsub.s32 4, %v1534
        %v1536 = vrot.slane %v1484, %v1535
        %v1537 = vlaneseq
        %v1538 = vshrl.u32 %v1537, 7
        %v1539 = vsub.s32 5, %v1538
        %v1540 = vrot.slane %v1484, %v1539
        %v1541 = vlaneseq
        %v1542 = vshrl.u32 %v1541, 7
        %v1543 = vsub.s32 6, %v1542
        %v1544 = vrot.slane %v1484, %v1543
        %v1545 = vlaneseq
        %v1546 = vshrl.u32 %v1545, 7
        %v1547 = vsub.s32 7, %v1546
        %v1548 = vrot.slane %v1484, %v1547
        %vm1549 = vcmp.eq.s32.totalorder %v1488, 1
        %vm1550 = vcmp.eq.s32.totalorder %v1492, 1
        %vm1551 = vcmp.eq.s32.totalorder %v1496, 1
        %vm1552 = vcmp.eq.s32.totalorder %v1500, 1
        %vm1553 = vcmp.eq.s32.totalorder %v1504, 1
        %vm1554 = vcmp.eq.s32.totalorder %v1508, 1
        %vm1555 = vcmp.eq.s32.totalorder %v1512, 1
        %vm1556 = vcmp.eq.s32.totalorder %v1516, 1
        %vm1557 = vcmp.eq.s32.totalorder %v1520, 1
        %vm1558 = vcmp.eq.s32.totalorder %v1524, 1
        %vm1559 = vcmp.eq.s32.totalorder %v1528, 1
        %vm1560 = vcmp.eq.s32.totalorder %v1532, 1
        %vm1561 = vcmp.eq.s32.totalorder %v1536, 1
        %vm1562 = vcmp.eq.s32.totalorder %v1540, 1
        %vm1563 = vcmp.eq.s32.totalorder %v1544, 1
        %vm1564 = vcmp.eq.s32.totalorder %v1548, 1
        %v1573 = vcombine.high %v1475, %v1475
        %v1574 = vcombine.high %v1476, %v1476
        %v1575 = vcombine.high %v1477, %v1477
        %v1576 = vcombine.high %v1478, %v1478
        %v1577 = vcombine.high %v1479, %v1479
        %v1578 = vcombine.high %v1480, %v1480
        %v1579 = vcombine.high %v1481, %v1481
        %v1580 = vcombine.high %v1482, %v1482
        %v1589 = vsel %vm1549, %v1475, 0.0
        %v1590 = vsel %vm1550, %v1573, 0.0
        %v1591 = vsel %vm1551, %v1476, 0.0
        %v1592 = vsel %vm1552, %v1574, 0.0
        %v1593 = vsel %vm1553, %v1477, 0.0
        %v1594 = vsel %vm1554, %v1575, 0.0
        %v1595 = vsel %vm1555, %v1478, 0.0
        %v1596 = vsel %vm1556, %v1576, 0.0
        %v1597 = vsel %vm1557, %v1479, 0.0
        %v1598 = vsel %vm1558, %v1577, 0.0
        %v1599 = vsel %vm1559, %v1480, 0.0
        %v1600 = vsel %vm1560, %v1578, 0.0
        %v1601 = vsel %vm1561, %v1481, 0.0
        %v1602 = vsel %vm1562, %v1579, 0.0
        %v1603 = vsel %vm1563, %v1482, 0.0
        %v1604 = vsel %vm1564, %v1580, 0.0
        %vm1605 = vcmask 1043456
        %v1606 = vsel %vm1605, %v1589, 0.0
        %v1607 = vrot.slane %v1606, 4
        %v1608 = vadd.f32 %v1606, %v1607
        %v1609 = vrot.slane %v1608, 2
        %v1610 = vadd.f32 %v1608, %v1609
        %v1611 = vrot.slane %v1610, 1
        %v1612 = vadd.f32 %v1610, %v1611
        %v1613 = vsel %vm1605, %v1590, 0.0
        %v1614 = vrot.slane %v1613, 4
        %v1615 = vadd.f32 %v1613, %v1614
        %v1616 = vrot.slane %v1615, 2
        %v1617 = vadd.f32 %v1615, %v1616
        %v1618 = vrot.slane %v1617, 1
        %v1619 = vadd.f32 %v1617, %v1618
        %v1620 = vsel %vm1605, %v1591, 0.0
        %v1621 = vrot.slane %v1620, 4
        %v1622 = vadd.f32 %v1620, %v1621
        %v1623 = vrot.slane %v1622, 2
        %v1624 = vadd.f32 %v1622, %v1623
        %v1625 = vrot.slane %v1624, 1
        %v1626 = vadd.f32 %v1624, %v1625
        %v1627 = vsel %vm1605, %v1592, 0.0
        %v1628 = vrot.slane %v1627, 4
        %v1629 = vadd.f32 %v1627, %v1628
        %v1630 = vrot.slane %v1629, 2
        %v1631 = vadd.f32 %v1629, %v1630
        %v1632 = vrot.slane %v1631, 1
        %v1633 = vadd.f32 %v1631, %v1632
        %v1634 = vsel %vm1605, %v1593, 0.0
        %v1635 = vrot.slane %v1634, 4
        %v1636 = vadd.f32 %v1634, %v1635
        %v1637 = vrot.slane %v1636, 2
        %v1638 = vadd.f32 %v1636, %v1637
        %v1639 = vrot.slane %v1638, 1
        %v1640 = vadd.f32 %v1638, %v1639
        %v1641 = vsel %vm1605, %v1594, 0.0
        %v1642 = vrot.slane %v1641, 4
        %v1643 = vadd.f32 %v1641, %v1642
        %v1644 = vrot.slane %v1643, 2
        %v1645 = vadd.f32 %v1643, %v1644
        %v1646 = vrot.slane %v1645, 1
        %v1647 = vadd.f32 %v1645, %v1646
        %v1648 = vsel %vm1605, %v1595, 0.0
        %v1649 = vrot.slane %v1648, 4
        %v1650 = vadd.f32 %v1648, %v1649
        %v1651 = vrot.slane %v1650, 2
        %v1652 = vadd.f32 %v1650, %v1651
        %v1653 = vrot.slane %v1652, 1
        %v1654 = vadd.f32 %v1652, %v1653
        %v1655 = vsel %vm1605, %v1596, 0.0
        %v1656 = vrot.slane %v1655, 4
        %v1657 = vadd.f32 %v1655, %v1656
        %v1658 = vrot.slane %v1657, 2
        %v1659 = vadd.f32 %v1657, %v1658
        %v1660 = vrot.slane %v1659, 1
        %v1661 = vadd.f32 %v1659, %v1660
        %v1662 = vsel %vm1605, %v1597, 0.0
        %v1663 = vrot.slane %v1662, 4
        %v1664 = vadd.f32 %v1662, %v1663
        %v1665 = vrot.slane %v1664, 2
        %v1666 = vadd.f32 %v1664, %v1665
        %v1667 = vrot.slane %v1666, 1
        %v1668 = vadd.f32 %v1666, %v1667
        %v1669 = vsel %vm1605, %v1598, 0.0
        %v1670 = vrot.slane %v1669, 4
        %v1671 = vadd.f32 %v1669, %v1670
        %v1672 = vrot.slane %v1671, 2
        %v1673 = vadd.f32 %v1671, %v1672
        %v1674 = vrot.slane %v1673, 1
        %v1675 = vadd.f32 %v1673, %v1674
        %v1676 = vsel %vm1605, %v1599, 0.0
        %v1677 = vrot.slane %v1676, 4
        %v1678 = vadd.f32 %v1676, %v1677
        %v1679 = vrot.slane %v1678, 2
        %v1680 = vadd.f32 %v1678, %v1679
        %v1681 = vrot.slane %v1680, 1
        %v1682 = vadd.f32 %v1680, %v1681
        %v1683 = vsel %vm1605, %v1600, 0.0
        %v1684 = vrot.slane %v1683, 4
        %v1685 = vadd.f32 %v1683, %v1684
        %v1686 = vrot.slane %v1685, 2
        %v1687 = vadd.f32 %v1685, %v1686
        %v1688 = vrot.slane %v1687, 1
        %v1689 = vadd.f32 %v1687, %v1688
        %v1690 = vsel %vm1605, %v1601, 0.0
        %v1691 = vrot.slane %v1690, 4
        %v1692 = vadd.f32 %v1690, %v1691
        %v1693 = vrot.slane %v1692, 2
        %v1694 = vadd.f32 %v1692, %v1693
        %v1695 = vrot.slane %v1694, 1
        %v1696 = vadd.f32 %v1694, %v1695
        %v1697 = vsel %vm1605, %v1602, 0.0
        %v1698 = vrot.slane %v1697, 4
        %v1699 = vadd.f32 %v1697, %v1698
        %v1700 = vrot.slane %v1699, 2
        %v1701 = vadd.f32 %v1699, %v1700
        %v1702 = vrot.slane %v1701, 1
        %v1703 = vadd.f32 %v1701, %v1702
        %v1704 = vsel %vm1605, %v1603, 0.0
        %v1705 = vrot.slane %v1704, 4
        %v1706 = vadd.f32 %v1704, %v1705
        %v1707 = vrot.slane %v1706, 2
        %v1708 = vadd.f32 %v1706, %v1707
        %v1709 = vrot.slane %v1708, 1
        %v1710 = vadd.f32 %v1708, %v1709
        %v1711 = vsel %vm1605, %v1604, 0.0
        %v1712 = vrot.slane %v1711, 4
        %v1713 = vadd.f32 %v1711, %v1712
        %v1714 = vrot.slane %v1713, 2
        %v1715 = vadd.f32 %v1713, %v1714
        %v1716 = vrot.slane %v1715, 1
        %v1717 = vadd.f32 %v1715, %v1716
        %v1718 = vcvt.s32.f32 %v1483
        %v1719 = vcvt.s32.f32 %v1484
        %v1722 = vlaneseq
        %v1723 = vshrl.u32 %v1722, 7
        %v1724 = vsub.s32 0, %v1723
        %v1725 = vrot.slane %v1718, %v1724
        %v1726 = vlaneseq
        %v1727 = vshrl.u32 %v1726, 7
        %v1728 = vsub.s32 1, %v1727
        %v1729 = vrot.slane %v1718, %v1728
        %v1730 = vlaneseq
        %v1731 = vshrl.u32 %v1730, 7
        %v1732 = vsub.s32 2, %v1731
        %v1733 = vrot.slane %v1718, %v1732
        %v1734 = vlaneseq
        %v1735 = vshrl.u32 %v1734, 7
        %v1736 = vsub.s32 3, %v1735
        %v1737 = vrot.slane %v1718, %v1736
        %v1738 = vlaneseq
        %v1739 = vshrl.u32 %v1738, 7
        %v1740 = vsub.s32 4, %v1739
        %v1741 = vrot.slane %v1718, %v1740
        %v1742 = vlaneseq
        %v1743 = vshrl.u32 %v1742, 7
        %v1744 = vsub.s32 5, %v1743
        %v1745 = vrot.slane %v1718, %v1744
        %v1746 = vlaneseq
        %v1747 = vshrl.u32 %v1746, 7
        %v1748 = vsub.s32 6, %v1747
        %v1749 = vrot.slane %v1718, %v1748
        %v1750 = vlaneseq
        %v1751 = vshrl.u32 %v1750, 7
        %v1752 = vsub.s32 7, %v1751
        %v1753 = vrot.slane %v1718, %v1752
        %v1754 = vlaneseq
        %v1755 = vshrl.u32 %v1754, 7
        %v1756 = vsub.s32 0, %v1755
        %v1757 = vrot.slane %v1719, %v1756
        %v1758 = vlaneseq
        %v1759 = vshrl.u32 %v1758, 7
        %v1760 = vsub.s32 1, %v1759
        %v1761 = vrot.slane %v1719, %v1760
        %v1762 = vlaneseq
        %v1763 = vshrl.u32 %v1762, 7
        %v1764 = vsub.s32 2, %v1763
        %v1765 = vrot.slane %v1719, %v1764
        %v1766 = vlaneseq
        %v1767 = vshrl.u32 %v1766, 7
        %v1768 = vsub.s32 3, %v1767
        %v1769 = vrot.slane %v1719, %v1768
        %v1770 = vlaneseq
        %v1771 = vshrl.u32 %v1770, 7
        %v1772 = vsub.s32 4, %v1771
        %v1773 = vrot.slane %v1719, %v1772
        %v1774 = vlaneseq
        %v1775 = vshrl.u32 %v1774, 7
        %v1776 = vsub.s32 5, %v1775
        %v1777 = vrot.slane %v1719, %v1776
        %v1778 = vlaneseq
        %v1779 = vshrl.u32 %v1778, 7
        %v1780 = vsub.s32 6, %v1779
        %v1781 = vrot.slane %v1719, %v1780
        %v1782 = vlaneseq
        %v1783 = vshrl.u32 %v1782, 7
        %v1784 = vsub.s32 7, %v1783
        %v1785 = vrot.slane %v1719, %v1784
        %vm1802 = vcmask 1040384
        %v1803 = vsel %vm1802, %v1200, %v1612
        %v1804 = vsel %vm1802, %v1201, %v1619
        %v1805 = vsel %vm1802, %v1202, %v1626
        %v1806 = vsel %vm1802, %v1203, %v1633
        %v1807 = vsel %vm1802, %v1204, %v1640
        %v1808 = vsel %vm1802, %v1205, %v1647
        %v1809 = vsel %vm1802, %v1206, %v1654
        %v1810 = vsel %vm1802, %v1207, %v1661
        %v1811 = vsel %vm1802, %v1208, %v1668
        %v1812 = vsel %vm1802, %v1209, %v1675
        %v1813 = vsel %vm1802, %v1210, %v1682
        %v1814 = vsel %vm1802, %v1211, %v1689
        %v1815 = vsel %vm1802, %v1212, %v1696
        %v1816 = vsel %vm1802, %v1213, %v1703
        %v1817 = vsel %vm1802, %v1214, %v1710
        %v1818 = vsel %vm1802, %v1215, %v1717
        %v1819 = vsel %vm1378, %v1803, %v1725
        %v1820 = vsel %vm1378, %v1804, %v1729
        %v1821 = vsel %vm1378, %v1805, %v1733
        %v1822 = vsel %vm1378, %v1806, %v1737
        %v1823 = vsel %vm1378, %v1807, %v1741
        %v1824 = vsel %vm1378, %v1808, %v1745
        %v1825 = vsel %vm1378, %v1809, %v1749
        %v1826 = vsel %vm1378, %v1810, %v1753
        %v1827 = vsel %vm1378, %v1811, %v1757
        %v1828 = vsel %vm1378, %v1812, %v1761
        %v1829 = vsel %vm1378, %v1813, %v1765
        %v1830 = vsel %vm1378, %v1814, %v1769
        %v1831 = vsel %vm1378, %v1815, %v1773
        %v1832 = vsel %vm1378, %v1816, %v1777
        %v1833 = vsel %vm1378, %v1817, %v1781
        %v1834 = vsel %vm1378, %v1818, %v1785
        %v1835 = vld [vmem:[%s433] sm:$0x77]
        %v1836 = vld [vmem:[%s433 + $0x8] sm:$0x77]
        %v1837 = vld [vmem:[%s433 + $0x10] sm:$0x77]
        %v1838 = vld [vmem:[%s433 + $0x18] sm:$0x77]
        %v1839 = vld [vmem:[%s433 + $0x20] sm:$0x77]
        %v1840 = vld [vmem:[%s433 + $0x28] sm:$0x77]
        %v1841 = vld [vmem:[%s433 + $0x30] sm:$0x77]
        %v1842 = vld [vmem:[%s433 + $0x38] sm:$0x77]
        %v1859 = vcombine.low %v1819, %v1820
        %v1860 = vcombine.low %v1821, %v1822
        %v1861 = vcombine.low %v1823, %v1824
        %v1862 = vcombine.low %v1825, %v1826
        %v1863 = vcombine.low %v1827, %v1828
        %v1864 = vcombine.low %v1829, %v1830
        %v1865 = vcombine.low %v1831, %v1832
        %v1866 = vcombine.low %v1833, %v1834
        %v1875 = vadd.f32 %v1835, %v1859
        %v1876 = vadd.f32 %v1836, %v1860
        %v1877 = vadd.f32 %v1837, %v1861
        %v1878 = vadd.f32 %v1838, %v1862
        %v1879 = vadd.f32 %v1839, %v1863
        %v1880 = vadd.f32 %v1840, %v1864
        %v1881 = vadd.f32 %v1841, %v1865
        %v1882 = vadd.f32 %v1842, %v1866
        %1883 = vst [vmem:[%s433] sm:$0x77] %v1875
        %1884 = vst [vmem:[%s433 + $0x8] sm:$0x77] %v1876
        %1885 = vst [vmem:[%s433 + $0x10] sm:$0x77] %v1877
        %1886 = vst [vmem:[%s433 + $0x18] sm:$0x77] %v1878
        %1887 = vst [vmem:[%s433 + $0x20] sm:$0x77] %v1879
        %1888 = vst [vmem:[%s433 + $0x28] sm:$0x77] %v1880
        %1889 = vst [vmem:[%s433 + $0x30] sm:$0x77] %v1881
        %1890 = vst [vmem:[%s433 + $0x38] sm:$0x77] %v1882
        %p1891 = scmp.lt.s32.totalorder %s30, 1
        %s1892 = scalar_select %p1891, %s30, 1
        %s1893 = smul.addr %s1892, 16
        %s1894 = smul.addr %s1893, 4
        %s1895 = scalar_lea.vmem %s6, %s1894
        // Predicated region
        $region69: #{tpu_custom_call.1} parent=43 // pred_check
          %p1896 = pneg %p215
        $region70: #{tpu_custom_call.1} parent=43 // pred_check_branch
          %1898 = sbr.rel (%p1896) target = $region72
        $region71: #{tpu_custom_call.1} parent=43 // pred_region
          _
        $region72: #{tpu_custom_call.1} parent=43 // pred_fallthru
          _
      $region44: #{tpu_custom_call.1} parent=5 // pred_fallthru
        _
      %p1899 = scmp.le.s32.totalorder 2, %s21
      // Predicated region
      $region73: #{tpu_custom_call.1} parent=5 // pred_check
        %p1900 = pneg %p1899
      $region74: #{tpu_custom_call.1} parent=5 // pred_check_branch
        %1902 = sbr.rel (%p1900) target = $region76
      $region75: #{tpu_custom_call.1} parent=5 // pred_region
        %s1903 = ssub.s32 %s21, 2
        // Predicated region
        $region77: #{tpu_custom_call.1} parent=75 // pred_check
          %p1904 = pneg %p221
        $region78: #{tpu_custom_call.1} parent=75 // pred_check_branch
          %1906 = sbr.rel (%p1904) target = $region80
        $region79: #{tpu_custom_call.1} parent=75 // pred_region
          %p1907 = scmp.lt.s32.totalorder %s32, 1
          %s1908 = scalar_select %p1907, %s32, 1
          %s1909 = smul.addr %s1908, 16
          %s1910 = smul.addr %s1909, 4
          %s1911 = scalar_lea.vmem %s6, %s1910
        $region80: #{tpu_custom_call.1} parent=75 // pred_fallthru
          _
      $region76: #{tpu_custom_call.1} parent=5 // pred_fallthru
        _
    $region6: #{tpu_custom_call.1} parent=1 // loop_footer
      %s25 = sadd.s32 1, %s21
    $region7: #{tpu_custom_call.1} parent=1 // loop_footer_branch
      %20 = sbr.rel target = $region3
    $region8: #{tpu_custom_call.1} parent=1 // loop_exit
      _
    %1912 = vsyncpa [#allocation3], 1
    %s1913 = scalar_lea.sflag [#allocation3], 1
    %1914 = vsyncpa %s1913, 1
    %1915 = vsyncpa [#allocation5], 1
    %s1916 = scalar_lea.sflag [#allocation5], 1
    %1917 = vsyncpa %s1916, 1
    %1918 = vsyncpa [#allocation8], 1
    %s1919 = scalar_lea.sflag [#allocation8], 1
    %1920 = vsyncpa %s1919, 1

</llo_original>
